<compile_context>
chip_gen: v7x
topology: tpu7x:2x2x1
jax: 0.10.0
libtpu: 0.0.40
codegen_flags: <defaults>
</compile_context>

<pallas_src>
import jax
import jax.numpy as jnp
from jax.experimental import pallas as pl
from jax.experimental.pallas import tpu as pltpu

IN_FEATURES = 1024
OUT_FEATURES = 1024


def linear_relu_kernel(x_ref, w_ref, b_ref, o_ref):
    # x_ref: (bm, K) activation tile
    # w_ref: (K, tn) weight column tile (streamed from HBM)
    # b_ref: (1, N)  full bias, resident in VMEM across all grid steps
    # o_ref: (bm, tn) output tile
    tn = o_ref.shape[-1]
    j = pl.program_id(1)
    start = pl.multiple_of(j * tn, 128)          # aligned lane-dim slice
    b_tile = b_ref[:, pl.ds(start, tn)]          # (1, tn) slice of resident bias

    y = jnp.dot(x_ref[...], w_ref[...], preferred_element_type=jnp.float32)
    y = y + b_tile                               # broadcast (1, tn) over rows
    o_ref[...] = jnp.maximum(y, 0.0).astype(o_ref.dtype)


def encoder_forward(x, w_t, b, *, tn=512):
    """relu(x @ w_t + b) via a Pallas kernel tiled over (batch, out-features).

    x:   (B, K) activations
    w_t: (K, N) weight, pre-transposed from torch's (out, in) layout
    b:   (N,)   bias
    """
    B, K = x.shape
    K2, N = w_t.shape
    assert K == K2 and N % tn == 0

    # Batch tile: full B for small batches; bound the resident activation
    # block once B grows (keeps VMEM in check on v7x's 64 MiB).
    if B > 256 and B % 256 == 0:
        bm = 256
    else:
        bm = B
    assert B % bm == 0

    b2 = b.reshape(1, N)

    cost = pl.CostEstimate(
        flops=2 * B * K * N,
        transcendentals=0,
        bytes_accessed=(B * K + K * N + N + B * N) * x.dtype.itemsize,
    )

    return pl.pallas_call(
        linear_relu_kernel,
        out_shape=jax.ShapeDtypeStruct((B, N), x.dtype),
        grid_spec=pltpu.PrefetchScalarGridSpec(
            num_scalar_prefetch=0,
            grid=(B // bm, N // tn),
            in_specs=[
                pl.BlockSpec((bm, K), lambda i, j: (i, 0)),   # activation tile
                pl.BlockSpec((K, tn), lambda i, j: (0, j)),   # weight column tile
                pl.BlockSpec((1, N), lambda i, j: (0, 0)),    # resident full bias
            ],
            out_specs=pl.BlockSpec((bm, tn), lambda i, j: (i, j)),
        ),
        compiler_params=pltpu.CompilerParams(
            dimension_semantics=("parallel", "parallel"),
        ),
        cost_estimate=cost,
    )(x, w_t, b2)


def init_params(key):
    """Deterministic init matching nn.Linear's default (uniform +/- 1/sqrt(fan_in))."""
    kw, kb = jax.random.split(key)
    bound = 1.0 / jnp.sqrt(jnp.float32(IN_FEATURES))
    # Torch weight is (out, in); store transposed (in, out) for y = x @ W_t.
    w_t = jax.random.uniform(kw, (IN_FEATURES, OUT_FEATURES), jnp.float32,
                             minval=-bound, maxval=bound)
    b = jax.random.uniform(kb, (OUT_FEATURES,), jnp.float32,
                           minval=-bound, maxval=bound)
    return w_t, b


if __name__ == "__main__":
    key = jax.random.PRNGKey(0)
    kx, kp = jax.random.split(key)

    batch = 8
    x = jax.random.normal(kx, (batch, IN_FEATURES), jnp.float32)
    w_t, b = init_params(kp)

    out = encoder_forward(x, w_t, b)
    out = jax.block_until_ready(out)

    # Reference check in plain JAX (same math as torch Linear + ReLU).
    ref = jnp.maximum(x @ w_t + b[None, :], 0.0)
    assert out.shape == (batch, OUT_FEATURES)
    assert jnp.allclose(out, ref, atol=1e-5, rtol=1e-5)

    print("KERNEL_OK")
</pallas_src>

<mosaic_0001>
module attributes {stable_mosaic.version = 11 : i64} {
  func.func @linear_relu_kernel(%arg0: i32, %arg1: i32, %arg2: memref<8x1024xf32, #tpu.memory_space<vmem>>, %arg3: memref<1024x512xf32, #tpu.memory_space<vmem>>, %arg4: memref<1x1024xf32, #tpu.memory_space<vmem>>, %arg5: memref<8x512xf32, #tpu.memory_space<vmem>>) attributes {dimension_semantics = [#tpu.dimension_semantics<parallel>, #tpu.dimension_semantics<parallel>], iteration_bounds = array<i64: 1, 2>, scalar_prefetch = 0 : i64, scratch_operands = 0 : i64, tpu.core_type = #tpu.core_type<tc>, window_params = [{transform_indices = @transform_0, window_bounds = array<i64: 8, 1024>}, {transform_indices = @transform_1, window_bounds = array<i64: 1024, 512>}, {pipeline_mode = #tpu.pipeline_mode<synchronous>, transform_indices = @transform_2, window_bounds = array<i64: 1, 1024>}, {transform_indices = @transform_3, window_bounds = array<i64: 8, 512>}]} {
    %c512_i32 = arith.constant 512 : i32
    %0 = arith.muli %arg1, %c512_i32 : i32
    %1 = tpu.assume_multiple %0, 128 : i32
    %c0 = arith.constant 0 : index
    %2 = arith.index_cast %1 : i32 to index
    %3 = vector.load %arg4[%c0, %2] : memref<1x1024xf32, #tpu.memory_space<vmem>>, vector<1x512xf32>
    %c0_0 = arith.constant 0 : index
    %c0_1 = arith.constant 0 : index
    %4 = vector.load %arg2[%c0_0, %c0_1] : memref<8x1024xf32, #tpu.memory_space<vmem>>, vector<8x1024xf32>
    %c0_2 = arith.constant 0 : index
    %c0_3 = arith.constant 0 : index
    %5 = vector.load %arg3[%c0_2, %c0_3] : memref<1024x512xf32, #tpu.memory_space<vmem>>, vector<1024x512xf32>
    %cst = arith.constant dense<0.000000e+00> : vector<8x512xf32>
    %6 = tpu.matmul %4, %5, %cst {dimension_numbers = #tpu.dot_dimension_numbers<[1], [0], [0], [1], [0, 0, 1, 1], [], []>} : vector<8x1024xf32>, vector<1024x512xf32>, vector<8x512xf32> -> vector<8x512xf32>
    %7 = vector.broadcast %3 : vector<1x512xf32> to vector<8x512xf32>
    %8 = arith.addf %6, %7 : vector<8x512xf32>
    %cst_4 = arith.constant 0.000000e+00 : f32
    %9 = vector.broadcast %cst_4 : f32 to vector<8x512xf32>
    %10 = arith.maximumf %8, %9 : vector<8x512xf32>
    %c0_5 = arith.constant 0 : index
    %c0_6 = arith.constant 0 : index
    %11 = vector.load %arg5[%c0_5, %c0_6] : memref<8x512xf32, #tpu.memory_space<vmem>>, vector<8x512xf32>
    tpu.vector_store %arg5[%c0_5, %c0_6], %10 {strides = array<i32>} : memref<8x512xf32, #tpu.memory_space<vmem>>, vector<8x512xf32>,
    return
  }
  func.func @transform_0(%arg0: i32, %arg1: i32) -> (i32, i32) {
    %c0_i32 = arith.constant 0 : i32
    %c0_i32_0 = arith.constant 0 : i32
    return %arg0, %c0_i32 : i32, i32
  }
  func.func @transform_1(%arg0: i32, %arg1: i32) -> (i32, i32) {
    %c0_i32 = arith.constant 0 : i32
    %c0_i32_0 = arith.constant 0 : i32
    return %c0_i32, %arg1 : i32, i32
  }
  func.func @transform_2(%arg0: i32, %arg1: i32) -> (i32, i32) {
    %c0_i32 = arith.constant 0 : i32
    %c0_i32_0 = arith.constant 0 : i32
    %c0_i32_1 = arith.constant 0 : i32
    return %c0_i32, %c0_i32_0 : i32, i32
  }
  func.func @transform_3(%arg0: i32, %arg1: i32) -> (i32, i32) {
    %c0_i32 = arith.constant 0 : i32
    return %arg0, %arg1 : i32, i32
  }
}

</mosaic_0001>

<llo_original>
// kernel: tpu_custom_call.1
$region0: #{tpu_custom_call.1}
  #allocation0 [shape = 'u32[]', space=smem, size = 0x4, offset = 0x4, fixed_abs, tag = 'smem constant byte address 0x4 - core index']
  #allocation1 [shape = 'u32[144,128]{1,0:T(1,128)}', space=vmem, size = 0x12000, scoped, tag = 'internal scratch']
  %s0 = inlined_call_operand.hbm [shape: f32[8,1024], index: 0, kind: input, shape index: {}]
  %s1 = inlined_call_operand.hbm [shape: f32[1024,1024], index: 1, kind: input, shape index: {}]
  %s2 = inlined_call_operand.hbm [shape: f32[1,1024], index: 2, kind: input, shape index: {}]
  %s3 = inlined_call_operand.hbm [shape: f32[8,1024], index: 3, kind: output, shape index: {}]
  %s4 = sld [smem:[#allocation0]]
  $region57: #{tpu_custom_call.1} parent=0
    _
  %s6 = ssub.s32 1, %s4
  %s7 = scalar_select 0, %s6, %s4
  $region1: #{tpu_custom_call.1} parent=0
    #allocation2 [shape = 'u8[32768]{0}', space=vmem, size = 0x8000, scoped, tag = 'input window, operand 0, single buffered']
    #allocation3 [shape = 's32[2]{0}', space=sflag, size = 0x8, scoped, tag = 'scoped memory for tpu_custom_call.1']
    #allocation4 [shape = 's32[2]{0}', space=sflag, size = 0x8, scoped, tag = 'scoped memory for tpu_custom_call.1']
    #allocation5 [shape = 'u8[4194304]{0}', space=vmem, size = 0x400000, scoped, tag = 'input window, operand 1']
    #allocation6 [shape = 's32[2]{0}', space=sflag, size = 0x8, scoped, tag = 'scoped memory for tpu_custom_call.1']
    #allocation7 [shape = 'u8[4096]{0}', space=vmem, size = 0x1000, scoped, tag = 'input window, operand 2, single buffered']
    #allocation8 [shape = 'u8[32768]{0}', space=vmem, size = 0x8000, scoped, tag = 'output window, operand 0']
    %8 = vsyncpa [#allocation3], 0
    %9 = vsyncpa [#allocation6], 0
    %s10 = scalar_lea.sflag [#allocation6], 1
    %11 = vsyncpa %s10, 0
    %12 = vsyncpa [#allocation4], 0
    %s13 = scalar_lea.sflag [#allocation4], 1
    %14 = vsyncpa %s13, 0
    loop: start=0, step=1, limit=4
    $region2: #{tpu_custom_call.1} parent=1 // loop_pre_header
      _
    $region3: #{tpu_custom_call.1} parent=1 // loop_header
      %s16 = sphi 0, %s20
      %p17 = scmp.ge.s32.totalorder %s16, 4
      %s23 = sphi 0, %s35
      %s24 = sphi 0, %s31
      %s25 = sphi 0, %s23
      %s26 = sphi 0, %s24
      %s27 = sphi 0, %s25
      %s28 = sphi 0, %s26
      %s38 = sphi 0, %s40
      %s41 = sphi 0, %s38
      %s42 = sphi 0, %s41
      %s58 = sphi 0, %s42
      %s64 = sphi 0, %s66
      %s67 = sphi 0, %s64
      %s68 = sphi 0, %s67
      %s84 = sphi 0, %s68
      %s88 = sphi 0, %s88
      %s90 = sphi 0, %s88
      %s91 = sphi 0, %s90
      %s105 = sphi 0, %s91
      %s113 = sphi 0, %s115
      %s116 = sphi 0, %s113
      %s117 = sphi 0, %s116
      %s133 = sphi 0, %s117
    $region4: #{tpu_custom_call.1} parent=1 // loop_header_branch
      %19 = sbr.rel (%p17) target = $region8
    $region5: #{tpu_custom_call.1} parent=1 // loop_body
      %s21 = ssub.s32 %s16, 1
      %s22 = ssub.s32 %s16, 2
      %s29 = sadd.s32 1, %s24
      %p30 = scmp.ge.s32.totalorder %s29, 2
      %s31 = scalar_select %p30, 0, %s29
      %s32 = sadd.s32 1, %s23
      %s33 = scalar_select %p30, %s32, %s23
      %p34 = scmp.ge.s32.totalorder %s33, 1
      %s35 = scalar_select %p34, 0, %s33
      %s36 = ssub.s32 %s23, %s35
      %p37 = scmp.eq.s32.totalorder %s36, 0
      %s39 = sadd.s32 %s38, 1
      %s40 = scalar_select %p37, %s38, %s39
      %p43 = pneg %p37
      %p44 = scmp.eq.s32.totalorder %s16, 1
      %p45 = por %p43, %p44
      %p46 = scmp.ne.s32.totalorder %s38, %s41
      %p47 = scmp.eq.s32.totalorder %s16, 0
      %p48 = por %p46, %p47
      %p49 = scmp.ne.s32.totalorder %s38, %s41
      %p50 = scmp.eq.s32.totalorder %s21, 1
      %p51 = por %p49, %p50
      %p52 = scmp.ne.s32.totalorder %s41, %s42
      %p53 = scmp.eq.s32.totalorder %s21, 0
      %p54 = por %p52, %p53
      %p55 = scmp.ne.s32.totalorder %s41, %s42
      %p56 = scmp.eq.s32.totalorder %s22, 1
      %p57 = por %p55, %p56
      %p59 = scmp.ne.s32.totalorder %s42, %s58
      %p60 = scmp.eq.s32.totalorder %s22, 0
      %p61 = por %p59, %p60
      %s62 = ssub.s32 %s24, %s31
      %p63 = scmp.eq.s32.totalorder %s62, 0
      %s65 = sadd.s32 %s64, 1
      %s66 = scalar_select %p63, %s64, %s65
      %p69 = pneg %p63
      %p70 = scmp.eq.s32.totalorder %s16, 1
      %p71 = por %p69, %p70
      %p72 = scmp.ne.s32.totalorder %s64, %s67
      %p73 = scmp.eq.s32.totalorder %s16, 0
      %p74 = por %p72, %p73
      %p75 = scmp.ne.s32.totalorder %s64, %s67
      %p76 = scmp.eq.s32.totalorder %s21, 1
      %p77 = por %p75, %p76
      %p78 = scmp.ne.s32.totalorder %s67, %s68
      %p79 = scmp.eq.s32.totalorder %s21, 0
      %p80 = por %p78, %p79
      %p81 = scmp.ne.s32.totalorder %s67, %s68
      %p82 = scmp.eq.s32.totalorder %s22, 1
      %p83 = por %p81, %p82
      %p85 = scmp.ne.s32.totalorder %s68, %s84
      %p86 = scmp.eq.s32.totalorder %s22, 0
      %p87 = por %p85, %p86
      %s89 = sadd.s32 %s88, 1
      %p92 = scmp.eq.s32.totalorder %s16, 1
      %p93 = scmp.ne.s32.totalorder %s88, %s90
      %p94 = scmp.eq.s32.totalorder %s16, 0
      %p95 = por %p93, %p94
      %p96 = scmp.ne.s32.totalorder %s88, %s90
      %p97 = scmp.eq.s32.totalorder %s21, 1
      %p98 = por %p96, %p97
      %p99 = scmp.ne.s32.totalorder %s90, %s91
      %p100 = scmp.eq.s32.totalorder %s21, 0
      %p101 = por %p99, %p100
      %p102 = scmp.ne.s32.totalorder %s90, %s91
      %p103 = scmp.eq.s32.totalorder %s22, 1
      %p104 = por %p102, %p103
      %p106 = scmp.ne.s32.totalorder %s91, %s105
      %p107 = scmp.eq.s32.totalorder %s22, 0
      %p108 = por %p106, %p107
      %s109 = ssub.s32 %s23, %s35
      %s110 = ssub.s32 %s24, %s31
      %s111 = sor.u32 %s109, %s110
      %p112 = scmp.eq.s32.totalorder %s111, 0
      %s114 = sadd.s32 %s113, 1
      %s115 = scalar_select %p112, %s113, %s114
      %p118 = pneg %p112
      %p119 = scmp.eq.s32.totalorder %s16, 1
      %p120 = por %p118, %p119
      %p121 = scmp.ne.s32.totalorder %s113, %s116
      %p122 = scmp.eq.s32.totalorder %s16, 0
      %p123 = por %p121, %p122
      %p124 = scmp.ne.s32.totalorder %s113, %s116
      %p125 = scmp.eq.s32.totalorder %s21, 1
      %p126 = por %p124, %p125
      %p127 = scmp.ne.s32.totalorder %s116, %s117
      %p128 = scmp.eq.s32.totalorder %s21, 0
      %p129 = por %p127, %p128
      %p130 = scmp.ne.s32.totalorder %s116, %s117
      %p131 = scmp.eq.s32.totalorder %s22, 1
      %p132 = por %p130, %p131
      %p134 = scmp.ne.s32.totalorder %s117, %s133
      %p135 = scmp.eq.s32.totalorder %s22, 0
      %p136 = por %p134, %p135
      %p137 = scmp.le.s32.totalorder 1, %s16
      %p138 = scmp.lt.s32.totalorder %s16, 3
      %p139 = pnand %p137, %p138
      %p140 = pneg %p139
      // Predicated region
      $region9: #{tpu_custom_call.1} parent=5 // pred_check
        _
      $region10: #{tpu_custom_call.1} parent=5 // pred_check_branch
        %142 = sbr.rel (%p139) target = $region12
      $region11: #{tpu_custom_call.1} parent=5 // pred_region
        %s143 = ssub.s32 %s16, 1
        // Predicated region
        $region13: #{tpu_custom_call.1} parent=11 // pred_check
          %p144 = pneg %p54
        $region14: #{tpu_custom_call.1} parent=11 // pred_check_branch
          %146 = sbr.rel (%p144) target = $region16
        $region15: #{tpu_custom_call.1} parent=11 // pred_region
          %s148 = ssub.s32 1024, 1024
          %149 = vsyncadd [#allocation3], %s148
          %s150 = smul.addr %s25, 8
          %s151 = smul.addr %s150, 128
          %s152 = scalar_lea.hbm %s0, %s151
          %s154 = sshll.u32 [#allocation2], 4
          %s155 = int_to_ptr.vmem [resolvable:$true] %s154
          %157 = dma.hbm_to_vmem [thread:$0]  %s152, 1024, %s155, [#allocation3]
        $region16: #{tpu_custom_call.1} parent=11 // pred_fallthru
          _
        // Predicated region
        $region17: #{tpu_custom_call.1} parent=11 // pred_check
          %p158 = pneg %p101
        $region18: #{tpu_custom_call.1} parent=11 // pred_check_branch
          %160 = sbr.rel (%p158) target = $region20
        $region19: #{tpu_custom_call.1} parent=11 // pred_region
          %s162 = ssub.s32 128, 128
          %163 = vsyncadd [#allocation6], %s162
          %s165 = sshll.u32 [#allocation7], 4
          %s166 = int_to_ptr.vmem [resolvable:$true] %s165
          %168 = dma.hbm_to_vmem [thread:$0]  %s2, 128, %s166, [#allocation6]
        $region20: #{tpu_custom_call.1} parent=11 // pred_fallthru
          _
      $region12: #{tpu_custom_call.1} parent=5 // pred_fallthru
        _
      %p169 = scmp.lt.s32.totalorder %s16, 2
      // Predicated region
      $region21: #{tpu_custom_call.1} parent=5 // pred_check
        %p170 = pneg %p169
      $region22: #{tpu_custom_call.1} parent=5 // pred_check_branch
        %172 = sbr.rel (%p170) target = $region24
      $region23: #{tpu_custom_call.1} parent=5 // pred_region
        // Predicated region
        $region25: #{tpu_custom_call.1} parent=23 // pred_check
          %p173 = pneg %p74
        $region26: #{tpu_custom_call.1} parent=23 // pred_check_branch
          %175 = sbr.rel (%p173) target = $region28
        $region27: #{tpu_custom_call.1} parent=23 // pred_region
          %s176 = sand.u32 %s16, 1
          %s177 = scalar_lea.sflag [#allocation6], %s176
          %s178 = sand.u32 %s64, 1
          %s179 = smul.addr %s178, 4096
          %s180 = scalar_lea.vmem [#allocation5], %s179
          %s181 = smul.u32 4, %s24
          %s183 = ssub.s32 65536, 65536
          %184 = vsyncadd %s177, %s183
          %s185 = smul.addr %s181, 128
          %s186 = scalar_lea.hbm %s1, %s185
          %s187 = sshll.u32 %s180, 4
          %s188 = int_to_ptr.vmem [resolvable:$true] %s187
          %193 = dma.hbm_to_vmem [thread:$0]  %s186, 65536, %s188, %s177, 1024, 512, 32
        $region28: #{tpu_custom_call.1} parent=23 // pred_fallthru
          _
      $region24: #{tpu_custom_call.1} parent=5 // pred_fallthru
        _
      %p194 = scmp.le.s32.totalorder 1, %s16
      %p195 = scmp.lt.s32.totalorder %s16, 3
      %p196 = pnand %p194, %p195
      %p197 = pneg %p196
      // Predicated region
      $region29: #{tpu_custom_call.1} parent=5 // pred_check
        _
      $region30: #{tpu_custom_call.1} parent=5 // pred_check_branch
        %199 = sbr.rel (%p196) target = $region32
      $region31: #{tpu_custom_call.1} parent=5 // pred_region
        %s200 = ssub.s32 %s16, 1
        // Predicated region
        $region33: #{tpu_custom_call.1} parent=31 // pred_check
          %p201 = pneg %p54
        $region34: #{tpu_custom_call.1} parent=31 // pred_check_branch
          %203 = sbr.rel (%p201) target = $region36
        $region35: #{tpu_custom_call.1} parent=31 // pred_region
          %204 = dma.done [#allocation3], 1024
        $region36: #{tpu_custom_call.1} parent=31 // pred_fallthru
          _
        %s205 = sand.u32 %s21, 1
        %s206 = scalar_lea.sflag [#allocation6], %s205
        %s207 = sand.u32 %s67, 1
        %s208 = smul.addr %s207, 4096
        %s209 = scalar_lea.vmem [#allocation5], %s208
        // Predicated region
        $region37: #{tpu_custom_call.1} parent=31 // pred_check
          %p210 = pneg %p80
        $region38: #{tpu_custom_call.1} parent=31 // pred_check_branch
          %212 = sbr.rel (%p210) target = $region40
        $region39: #{tpu_custom_call.1} parent=31 // pred_region
          %213 = dma.done %s206, 65536
        $region40: #{tpu_custom_call.1} parent=31 // pred_fallthru
          _
        // Predicated region
        $region41: #{tpu_custom_call.1} parent=31 // pred_check
          %p214 = pneg %p101
        $region42: #{tpu_custom_call.1} parent=31 // pred_check_branch
          %216 = sbr.rel (%p214) target = $region44
        $region43: #{tpu_custom_call.1} parent=31 // pred_region
          %217 = dma.done [#allocation6], 128
        $region44: #{tpu_custom_call.1} parent=31 // pred_fallthru
          _
        %p218 = pneg %p54
        %p219 = pneg %p51
        %s220 = sand.u32 %s21, 1
        %s221 = scalar_lea.sflag [#allocation6], %s220
        %s222 = sand.u32 %s67, 1
        %s223 = smul.addr %s222, 4096
        %s224 = scalar_lea.vmem [#allocation5], %s223
        %p225 = pneg %p80
        %p226 = pneg %p77
        %p227 = pneg %p101
        %p228 = pneg %p98
        %p229 = pneg %p129
        %p230 = pneg %p126
        %s231 = sand.u32 %s116, 1
        %s232 = scalar_lea.sflag [#allocation4], %s231
        %s233 = sand.u32 %s116, 1
        %s234 = smul.addr %s233, 32
        %s235 = scalar_lea.vmem [#allocation8], %s234
        %s236 = smul.u32 4, %s26
        %s237 = smul.u32 4, %s26
        %s238 = smul.u32 %s26, 512
        %s239 = sshra.s32 %s238, 7
        %s240 = sand.u32 %s238, 127
        %s241 = scalar_lea.vmem [#allocation7], %s239
        %v242 = vld [vmem:[%s241] sm:$0xf]
        %v243 = vld [vmem:[#allocation2] sm:$0xff]
        %v244 = vld [vmem:[#allocation2 + $0x8] sm:$0xff]
        %v245 = vld [vmem:[#allocation2 + $0x10] sm:$0xff]
        %v246 = vld [vmem:[#allocation2 + $0x18] sm:$0xff]
        %v247 = vld [vmem:[#allocation2 + $0x20] sm:$0xff]
        %v248 = vld [vmem:[#allocation2 + $0x28] sm:$0xff]
        %v249 = vld [vmem:[#allocation2 + $0x30] sm:$0xff]
        %v250 = vld [vmem:[#allocation2 + $0x38] sm:$0xff]
        %v251 = vld [vmem:[%s209] sm:$0xff]
        %v252 = vld [vmem:[%s209 + $0x8] sm:$0xff]
        %v253 = vld [vmem:[%s209 + $0x10] sm:$0xff]
        %v254 = vld [vmem:[%s209 + $0x18] sm:$0xff]
        %v255 = vld [vmem:[%s209 + $0x20] sm:$0xff]
        %v256 = vld [vmem:[%s209 + $0x28] sm:$0xff]
        %v257 = vld [vmem:[%s209 + $0x30] sm:$0xff]
        %v258 = vld [vmem:[%s209 + $0x38] sm:$0xff]
        %v259 = vld [vmem:[%s209 + $0x40] sm:$0xff]
        %v260 = vld [vmem:[%s209 + $0x48] sm:$0xff]
        %v261 = vld [vmem:[%s209 + $0x50] sm:$0xff]
        %v262 = vld [vmem:[%s209 + $0x58] sm:$0xff]
        %v263 = vld [vmem:[%s209 + $0x60] sm:$0xff]
        %v264 = vld [vmem:[%s209 + $0x68] sm:$0xff]
        %v265 = vld [vmem:[%s209 + $0x70] sm:$0xff]
        %v266 = vld [vmem:[%s209 + $0x78] sm:$0xff]
        %v267 = vld [vmem:[%s209 + $0x80] sm:$0xff]
        %v268 = vld [vmem:[%s209 + $0x88] sm:$0xff]
        %v269 = vld [vmem:[%s209 + $0x90] sm:$0xff]
        %v270 = vld [vmem:[%s209 + $0x98] sm:$0xff]
        %v271 = vld [vmem:[%s209 + $0xa0] sm:$0xff]
        %v272 = vld [vmem:[%s209 + $0xa8] sm:$0xff]
        %v273 = vld [vmem:[%s209 + $0xb0] sm:$0xff]
        %v274 = vld [vmem:[%s209 + $0xb8] sm:$0xff]
        %v275 = vld [vmem:[%s209 + $0xc0] sm:$0xff]
        %v276 = vld [vmem:[%s209 + $0xc8] sm:$0xff]
        %v277 = vld [vmem:[%s209 + $0xd0] sm:$0xff]
        %v278 = vld [vmem:[%s209 + $0xd8] sm:$0xff]
        %v279 = vld [vmem:[%s209 + $0xe0] sm:$0xff]
        %v280 = vld [vmem:[%s209 + $0xe8] sm:$0xff]
        %v281 = vld [vmem:[%s209 + $0xf0] sm:$0xff]
        %v282 = vld [vmem:[%s209 + $0xf8] sm:$0xff]
        %v283 = vld [vmem:[%s209 + $0x100] sm:$0xff]
        %v284 = vld [vmem:[%s209 + $0x108] sm:$0xff]
        %v285 = vld [vmem:[%s209 + $0x110] sm:$0xff]
        %v286 = vld [vmem:[%s209 + $0x118] sm:$0xff]
        %v287 = vld [vmem:[%s209 + $0x120] sm:$0xff]
        %v288 = vld [vmem:[%s209 + $0x128] sm:$0xff]
        %v289 = vld [vmem:[%s209 + $0x130] sm:$0xff]
        %v290 = vld [vmem:[%s209 + $0x138] sm:$0xff]
        %v291 = vld [vmem:[%s209 + $0x140] sm:$0xff]
        %v292 = vld [vmem:[%s209 + $0x148] sm:$0xff]
        %v293 = vld [vmem:[%s209 + $0x150] sm:$0xff]
        %v294 = vld [vmem:[%s209 + $0x158] sm:$0xff]
        %v295 = vld [vmem:[%s209 + $0x160] sm:$0xff]
        %v296 = vld [vmem:[%s209 + $0x168] sm:$0xff]
        %v297 = vld [vmem:[%s209 + $0x170] sm:$0xff]
        %v298 = vld [vmem:[%s209 + $0x178] sm:$0xff]
        %v299 = vld [vmem:[%s209 + $0x180] sm:$0xff]
        %v300 = vld [vmem:[%s209 + $0x188] sm:$0xff]
        %v301 = vld [vmem:[%s209 + $0x190] sm:$0xff]
        %v302 = vld [vmem:[%s209 + $0x198] sm:$0xff]
        %v303 = vld [vmem:[%s209 + $0x1a0] sm:$0xff]
        %v304 = vld [vmem:[%s209 + $0x1a8] sm:$0xff]
        %v305 = vld [vmem:[%s209 + $0x1b0] sm:$0xff]
        %v306 = vld [vmem:[%s209 + $0x1b8] sm:$0xff]
        %v307 = vld [vmem:[%s209 + $0x1c0] sm:$0xff]
        %v308 = vld [vmem:[%s209 + $0x1c8] sm:$0xff]
        %v309 = vld [vmem:[%s209 + $0x1d0] sm:$0xff]
        %v310 = vld [vmem:[%s209 + $0x1d8] sm:$0xff]
        %v311 = vld [vmem:[%s209 + $0x1e0] sm:$0xff]
        %v312 = vld [vmem:[%s209 + $0x1e8] sm:$0xff]
        %v313 = vld [vmem:[%s209 + $0x1f0] sm:$0xff]
        %v314 = vld [vmem:[%s209 + $0x1f8] sm:$0xff]
        %v315 = vld [vmem:[%s209 + $0x200] sm:$0xff]
        %v316 = vld [vmem:[%s209 + $0x208] sm:$0xff]
        %v317 = vld [vmem:[%s209 + $0x210] sm:$0xff]
        %v318 = vld [vmem:[%s209 + $0x218] sm:$0xff]
        %v319 = vld [vmem:[%s209 + $0x220] sm:$0xff]
        %v320 = vld [vmem:[%s209 + $0x228] sm:$0xff]
        %v321 = vld [vmem:[%s209 + $0x230] sm:$0xff]
        %v322 = vld [vmem:[%s209 + $0x238] sm:$0xff]
        %v323 = vld [vmem:[%s209 + $0x240] sm:$0xff]
        %v324 = vld [vmem:[%s209 + $0x248] sm:$0xff]
        %v325 = vld [vmem:[%s209 + $0x250] sm:$0xff]
        %v326 = vld [vmem:[%s209 + $0x258] sm:$0xff]
        %v327 = vld [vmem:[%s209 + $0x260] sm:$0xff]
        %v328 = vld [vmem:[%s209 + $0x268] sm:$0xff]
        %v329 = vld [vmem:[%s209 + $0x270] sm:$0xff]
        %v330 = vld [vmem:[%s209 + $0x278] sm:$0xff]
        %v331 = vld [vmem:[%s209 + $0x280] sm:$0xff]
        %v332 = vld [vmem:[%s209 + $0x288] sm:$0xff]
        %v333 = vld [vmem:[%s209 + $0x290] sm:$0xff]
        %v334 = vld [vmem:[%s209 + $0x298] sm:$0xff]
        %v335 = vld [vmem:[%s209 + $0x2a0] sm:$0xff]
        %v336 = vld [vmem:[%s209 + $0x2a8] sm:$0xff]
        %v337 = vld [vmem:[%s209 + $0x2b0] sm:$0xff]
        %v338 = vld [vmem:[%s209 + $0x2b8] sm:$0xff]
        %v339 = vld [vmem:[%s209 + $0x2c0] sm:$0xff]
        %v340 = vld [vmem:[%s209 + $0x2c8] sm:$0xff]
        %v341 = vld [vmem:[%s209 + $0x2d0] sm:$0xff]
        %v342 = vld [vmem:[%s209 + $0x2d8] sm:$0xff]
        %v343 = vld [vmem:[%s209 + $0x2e0] sm:$0xff]
        %v344 = vld [vmem:[%s209 + $0x2e8] sm:$0xff]
        %v345 = vld [vmem:[%s209 + $0x2f0] sm:$0xff]
        %v346 = vld [vmem:[%s209 + $0x2f8] sm:$0xff]
        %v347 = vld [vmem:[%s209 + $0x300] sm:$0xff]
        %v348 = vld [vmem:[%s209 + $0x308] sm:$0xff]
        %v349 = vld [vmem:[%s209 + $0x310] sm:$0xff]
        %v350 = vld [vmem:[%s209 + $0x318] sm:$0xff]
        %v351 = vld [vmem:[%s209 + $0x320] sm:$0xff]
        %v352 = vld [vmem:[%s209 + $0x328] sm:$0xff]
        %v353 = vld [vmem:[%s209 + $0x330] sm:$0xff]
        %v354 = vld [vmem:[%s209 + $0x338] sm:$0xff]
        %v355 = vld [vmem:[%s209 + $0x340] sm:$0xff]
        %v356 = vld [vmem:[%s209 + $0x348] sm:$0xff]
        %v357 = vld [vmem:[%s209 + $0x350] sm:$0xff]
        %v358 = vld [vmem:[%s209 + $0x358] sm:$0xff]
        %v359 = vld [vmem:[%s209 + $0x360] sm:$0xff]
        %v360 = vld [vmem:[%s209 + $0x368] sm:$0xff]
        %v361 = vld [vmem:[%s209 + $0x370] sm:$0xff]
        %v362 = vld [vmem:[%s209 + $0x378] sm:$0xff]
        %v363 = vld [vmem:[%s209 + $0x380] sm:$0xff]
        %v364 = vld [vmem:[%s209 + $0x388] sm:$0xff]
        %v365 = vld [vmem:[%s209 + $0x390] sm:$0xff]
        %v366 = vld [vmem:[%s209 + $0x398] sm:$0xff]
        %v367 = vld [vmem:[%s209 + $0x3a0] sm:$0xff]
        %v368 = vld [vmem:[%s209 + $0x3a8] sm:$0xff]
        %v369 = vld [vmem:[%s209 + $0x3b0] sm:$0xff]
        %v370 = vld [vmem:[%s209 + $0x3b8] sm:$0xff]
        %v371 = vld [vmem:[%s209 + $0x3c0] sm:$0xff]
        %v372 = vld [vmem:[%s209 + $0x3c8] sm:$0xff]
        %v373 = vld [vmem:[%s209 + $0x3d0] sm:$0xff]
        %v374 = vld [vmem:[%s209 + $0x3d8] sm:$0xff]
        %v375 = vld [vmem:[%s209 + $0x3e0] sm:$0xff]
        %v376 = vld [vmem:[%s209 + $0x3e8] sm:$0xff]
        %v377 = vld [vmem:[%s209 + $0x3f0] sm:$0xff]
        %v378 = vld [vmem:[%s209 + $0x3f8] sm:$0xff]
        %v379 = vld [vmem:[%s209 + $0x400] sm:$0xff]
        %v380 = vld [vmem:[%s209 + $0x408] sm:$0xff]
        %v381 = vld [vmem:[%s209 + $0x410] sm:$0xff]
        %v382 = vld [vmem:[%s209 + $0x418] sm:$0xff]
        %v383 = vld [vmem:[%s209 + $0x420] sm:$0xff]
        %v384 = vld [vmem:[%s209 + $0x428] sm:$0xff]
        %v385 = vld [vmem:[%s209 + $0x430] sm:$0xff]
        %v386 = vld [vmem:[%s209 + $0x438] sm:$0xff]
        %v387 = vld [vmem:[%s209 + $0x440] sm:$0xff]
        %v388 = vld [vmem:[%s209 + $0x448] sm:$0xff]
        %v389 = vld [vmem:[%s209 + $0x450] sm:$0xff]
        %v390 = vld [vmem:[%s209 + $0x458] sm:$0xff]
        %v391 = vld [vmem:[%s209 + $0x460] sm:$0xff]
        %v392 = vld [vmem:[%s209 + $0x468] sm:$0xff]
        %v393 = vld [vmem:[%s209 + $0x470] sm:$0xff]
        %v394 = vld [vmem:[%s209 + $0x478] sm:$0xff]
        %v395 = vld [vmem:[%s209 + $0x480] sm:$0xff]
        %v396 = vld [vmem:[%s209 + $0x488] sm:$0xff]
        %v397 = vld [vmem:[%s209 + $0x490] sm:$0xff]
        %v398 = vld [vmem:[%s209 + $0x498] sm:$0xff]
        %v399 = vld [vmem:[%s209 + $0x4a0] sm:$0xff]
        %v400 = vld [vmem:[%s209 + $0x4a8] sm:$0xff]
        %v401 = vld [vmem:[%s209 + $0x4b0] sm:$0xff]
        %v402 = vld [vmem:[%s209 + $0x4b8] sm:$0xff]
        %v403 = vld [vmem:[%s209 + $0x4c0] sm:$0xff]
        %v404 = vld [vmem:[%s209 + $0x4c8] sm:$0xff]
        %v405 = vld [vmem:[%s209 + $0x4d0] sm:$0xff]
        %v406 = vld [vmem:[%s209 + $0x4d8] sm:$0xff]
        %v407 = vld [vmem:[%s209 + $0x4e0] sm:$0xff]
        %v408 = vld [vmem:[%s209 + $0x4e8] sm:$0xff]
        %v409 = vld [vmem:[%s209 + $0x4f0] sm:$0xff]
        %v410 = vld [vmem:[%s209 + $0x4f8] sm:$0xff]
        %v411 = vld [vmem:[%s209 + $0x500] sm:$0xff]
        %v412 = vld [vmem:[%s209 + $0x508] sm:$0xff]
        %v413 = vld [vmem:[%s209 + $0x510] sm:$0xff]
        %v414 = vld [vmem:[%s209 + $0x518] sm:$0xff]
        %v415 = vld [vmem:[%s209 + $0x520] sm:$0xff]
        %v416 = vld [vmem:[%s209 + $0x528] sm:$0xff]
        %v417 = vld [vmem:[%s209 + $0x530] sm:$0xff]
        %v418 = vld [vmem:[%s209 + $0x538] sm:$0xff]
        %v419 = vld [vmem:[%s209 + $0x540] sm:$0xff]
        %v420 = vld [vmem:[%s209 + $0x548] sm:$0xff]
        %v421 = vld [vmem:[%s209 + $0x550] sm:$0xff]
        %v422 = vld [vmem:[%s209 + $0x558] sm:$0xff]
        %v423 = vld [vmem:[%s209 + $0x560] sm:$0xff]
        %v424 = vld [vmem:[%s209 + $0x568] sm:$0xff]
        %v425 = vld [vmem:[%s209 + $0x570] sm:$0xff]
        %v426 = vld [vmem:[%s209 + $0x578] sm:$0xff]
        %v427 = vld [vmem:[%s209 + $0x580] sm:$0xff]
        %v428 = vld [vmem:[%s209 + $0x588] sm:$0xff]
        %v429 = vld [vmem:[%s209 + $0x590] sm:$0xff]
        %v430 = vld [vmem:[%s209 + $0x598] sm:$0xff]
        %v431 = vld [vmem:[%s209 + $0x5a0] sm:$0xff]
        %v432 = vld [vmem:[%s209 + $0x5a8] sm:$0xff]
        %v433 = vld [vmem:[%s209 + $0x5b0] sm:$0xff]
        %v434 = vld [vmem:[%s209 + $0x5b8] sm:$0xff]
        %v435 = vld [vmem:[%s209 + $0x5c0] sm:$0xff]
        %v436 = vld [vmem:[%s209 + $0x5c8] sm:$0xff]
        %v437 = vld [vmem:[%s209 + $0x5d0] sm:$0xff]
        %v438 = vld [vmem:[%s209 + $0x5d8] sm:$0xff]
        %v439 = vld [vmem:[%s209 + $0x5e0] sm:$0xff]
        %v440 = vld [vmem:[%s209 + $0x5e8] sm:$0xff]
        %v441 = vld [vmem:[%s209 + $0x5f0] sm:$0xff]
        %v442 = vld [vmem:[%s209 + $0x5f8] sm:$0xff]
        %v443 = vld [vmem:[%s209 + $0x600] sm:$0xff]
        %v444 = vld [vmem:[%s209 + $0x608] sm:$0xff]
        %v445 = vld [vmem:[%s209 + $0x610] sm:$0xff]
        %v446 = vld [vmem:[%s209 + $0x618] sm:$0xff]
        %v447 = vld [vmem:[%s209 + $0x620] sm:$0xff]
        %v448 = vld [vmem:[%s209 + $0x628] sm:$0xff]
        %v449 = vld [vmem:[%s209 + $0x630] sm:$0xff]
        %v450 = vld [vmem:[%s209 + $0x638] sm:$0xff]
        %v451 = vld [vmem:[%s209 + $0x640] sm:$0xff]
        %v452 = vld [vmem:[%s209 + $0x648] sm:$0xff]
        %v453 = vld [vmem:[%s209 + $0x650] sm:$0xff]
        %v454 = vld [vmem:[%s209 + $0x658] sm:$0xff]
        %v455 = vld [vmem:[%s209 + $0x660] sm:$0xff]
        %v456 = vld [vmem:[%s209 + $0x668] sm:$0xff]
        %v457 = vld [vmem:[%s209 + $0x670] sm:$0xff]
        %v458 = vld [vmem:[%s209 + $0x678] sm:$0xff]
        %v459 = vld [vmem:[%s209 + $0x680] sm:$0xff]
        %v460 = vld [vmem:[%s209 + $0x688] sm:$0xff]
        %v461 = vld [vmem:[%s209 + $0x690] sm:$0xff]
        %v462 = vld [vmem:[%s209 + $0x698] sm:$0xff]
        %v463 = vld [vmem:[%s209 + $0x6a0] sm:$0xff]
        %v464 = vld [vmem:[%s209 + $0x6a8] sm:$0xff]
        %v465 = vld [vmem:[%s209 + $0x6b0] sm:$0xff]
        %v466 = vld [vmem:[%s209 + $0x6b8] sm:$0xff]
        %v467 = vld [vmem:[%s209 + $0x6c0] sm:$0xff]
        %v468 = vld [vmem:[%s209 + $0x6c8] sm:$0xff]
        %v469 = vld [vmem:[%s209 + $0x6d0] sm:$0xff]
        %v470 = vld [vmem:[%s209 + $0x6d8] sm:$0xff]
        %v471 = vld [vmem:[%s209 + $0x6e0] sm:$0xff]
        %v472 = vld [vmem:[%s209 + $0x6e8] sm:$0xff]
        %v473 = vld [vmem:[%s209 + $0x6f0] sm:$0xff]
        %v474 = vld [vmem:[%s209 + $0x6f8] sm:$0xff]
        %v475 = vld [vmem:[%s209 + $0x700] sm:$0xff]
        %v476 = vld [vmem:[%s209 + $0x708] sm:$0xff]
        %v477 = vld [vmem:[%s209 + $0x710] sm:$0xff]
        %v478 = vld [vmem:[%s209 + $0x718] sm:$0xff]
        %v479 = vld [vmem:[%s209 + $0x720] sm:$0xff]
        %v480 = vld [vmem:[%s209 + $0x728] sm:$0xff]
        %v481 = vld [vmem:[%s209 + $0x730] sm:$0xff]
        %v482 = vld [vmem:[%s209 + $0x738] sm:$0xff]
        %v483 = vld [vmem:[%s209 + $0x740] sm:$0xff]
        %v484 = vld [vmem:[%s209 + $0x748] sm:$0xff]
        %v485 = vld [vmem:[%s209 + $0x750] sm:$0xff]
        %v486 = vld [vmem:[%s209 + $0x758] sm:$0xff]
        %v487 = vld [vmem:[%s209 + $0x760] sm:$0xff]
        %v488 = vld [vmem:[%s209 + $0x768] sm:$0xff]
        %v489 = vld [vmem:[%s209 + $0x770] sm:$0xff]
        %v490 = vld [vmem:[%s209 + $0x778] sm:$0xff]
        %v491 = vld [vmem:[%s209 + $0x780] sm:$0xff]
        %v492 = vld [vmem:[%s209 + $0x788] sm:$0xff]
        %v493 = vld [vmem:[%s209 + $0x790] sm:$0xff]
        %v494 = vld [vmem:[%s209 + $0x798] sm:$0xff]
        %v495 = vld [vmem:[%s209 + $0x7a0] sm:$0xff]
        %v496 = vld [vmem:[%s209 + $0x7a8] sm:$0xff]
        %v497 = vld [vmem:[%s209 + $0x7b0] sm:$0xff]
        %v498 = vld [vmem:[%s209 + $0x7b8] sm:$0xff]
        %v499 = vld [vmem:[%s209 + $0x7c0] sm:$0xff]
        %v500 = vld [vmem:[%s209 + $0x7c8] sm:$0xff]
        %v501 = vld [vmem:[%s209 + $0x7d0] sm:$0xff]
        %v502 = vld [vmem:[%s209 + $0x7d8] sm:$0xff]
        %v503 = vld [vmem:[%s209 + $0x7e0] sm:$0xff]
        %v504 = vld [vmem:[%s209 + $0x7e8] sm:$0xff]
        %v505 = vld [vmem:[%s209 + $0x7f0] sm:$0xff]
        %v506 = vld [vmem:[%s209 + $0x7f8] sm:$0xff]
        %v507 = vld [vmem:[%s209 + $0x800] sm:$0xff]
        %v508 = vld [vmem:[%s209 + $0x808] sm:$0xff]
        %v509 = vld [vmem:[%s209 + $0x810] sm:$0xff]
        %v510 = vld [vmem:[%s209 + $0x818] sm:$0xff]
        %v511 = vld [vmem:[%s209 + $0x820] sm:$0xff]
        %v512 = vld [vmem:[%s209 + $0x828] sm:$0xff]
        %v513 = vld [vmem:[%s209 + $0x830] sm:$0xff]
        %v514 = vld [vmem:[%s209 + $0x838] sm:$0xff]
        %v515 = vld [vmem:[%s209 + $0x840] sm:$0xff]
        %v516 = vld [vmem:[%s209 + $0x848] sm:$0xff]
        %v517 = vld [vmem:[%s209 + $0x850] sm:$0xff]
        %v518 = vld [vmem:[%s209 + $0x858] sm:$0xff]
        %v519 = vld [vmem:[%s209 + $0x860] sm:$0xff]
        %v520 = vld [vmem:[%s209 + $0x868] sm:$0xff]
        %v521 = vld [vmem:[%s209 + $0x870] sm:$0xff]
        %v522 = vld [vmem:[%s209 + $0x878] sm:$0xff]
        %v523 = vld [vmem:[%s209 + $0x880] sm:$0xff]
        %v524 = vld [vmem:[%s209 + $0x888] sm:$0xff]
        %v525 = vld [vmem:[%s209 + $0x890] sm:$0xff]
        %v526 = vld [vmem:[%s209 + $0x898] sm:$0xff]
        %v527 = vld [vmem:[%s209 + $0x8a0] sm:$0xff]
        %v528 = vld [vmem:[%s209 + $0x8a8] sm:$0xff]
        %v529 = vld [vmem:[%s209 + $0x8b0] sm:$0xff]
        %v530 = vld [vmem:[%s209 + $0x8b8] sm:$0xff]
        %v531 = vld [vmem:[%s209 + $0x8c0] sm:$0xff]
        %v532 = vld [vmem:[%s209 + $0x8c8] sm:$0xff]
        %v533 = vld [vmem:[%s209 + $0x8d0] sm:$0xff]
        %v534 = vld [vmem:[%s209 + $0x8d8] sm:$0xff]
        %v535 = vld [vmem:[%s209 + $0x8e0] sm:$0xff]
        %v536 = vld [vmem:[%s209 + $0x8e8] sm:$0xff]
        %v537 = vld [vmem:[%s209 + $0x8f0] sm:$0xff]
        %v538 = vld [vmem:[%s209 + $0x8f8] sm:$0xff]
        %v539 = vld [vmem:[%s209 + $0x900] sm:$0xff]
        %v540 = vld [vmem:[%s209 + $0x908] sm:$0xff]
        %v541 = vld [vmem:[%s209 + $0x910] sm:$0xff]
        %v542 = vld [vmem:[%s209 + $0x918] sm:$0xff]
        %v543 = vld [vmem:[%s209 + $0x920] sm:$0xff]
        %v544 = vld [vmem:[%s209 + $0x928] sm:$0xff]
        %v545 = vld [vmem:[%s209 + $0x930] sm:$0xff]
        %v546 = vld [vmem:[%s209 + $0x938] sm:$0xff]
        %v547 = vld [vmem:[%s209 + $0x940] sm:$0xff]
        %v548 = vld [vmem:[%s209 + $0x948] sm:$0xff]
        %v549 = vld [vmem:[%s209 + $0x950] sm:$0xff]
        %v550 = vld [vmem:[%s209 + $0x958] sm:$0xff]
        %v551 = vld [vmem:[%s209 + $0x960] sm:$0xff]
        %v552 = vld [vmem:[%s209 + $0x968] sm:$0xff]
        %v553 = vld [vmem:[%s209 + $0x970] sm:$0xff]
        %v554 = vld [vmem:[%s209 + $0x978] sm:$0xff]
        %v555 = vld [vmem:[%s209 + $0x980] sm:$0xff]
        %v556 = vld [vmem:[%s209 + $0x988] sm:$0xff]
        %v557 = vld [vmem:[%s209 + $0x990] sm:$0xff]
        %v558 = vld [vmem:[%s209 + $0x998] sm:$0xff]
        %v559 = vld [vmem:[%s209 + $0x9a0] sm:$0xff]
        %v560 = vld [vmem:[%s209 + $0x9a8] sm:$0xff]
        %v561 = vld [vmem:[%s209 + $0x9b0] sm:$0xff]
        %v562 = vld [vmem:[%s209 + $0x9b8] sm:$0xff]
        %v563 = vld [vmem:[%s209 + $0x9c0] sm:$0xff]
        %v564 = vld [vmem:[%s209 + $0x9c8] sm:$0xff]
        %v565 = vld [vmem:[%s209 + $0x9d0] sm:$0xff]
        %v566 = vld [vmem:[%s209 + $0x9d8] sm:$0xff]
        %v567 = vld [vmem:[%s209 + $0x9e0] sm:$0xff]
        %v568 = vld [vmem:[%s209 + $0x9e8] sm:$0xff]
        %v569 = vld [vmem:[%s209 + $0x9f0] sm:$0xff]
        %v570 = vld [vmem:[%s209 + $0x9f8] sm:$0xff]
        %v571 = vld [vmem:[%s209 + $0xa00] sm:$0xff]
        %v572 = vld [vmem:[%s209 + $0xa08] sm:$0xff]
        %v573 = vld [vmem:[%s209 + $0xa10] sm:$0xff]
        %v574 = vld [vmem:[%s209 + $0xa18] sm:$0xff]
        %v575 = vld [vmem:[%s209 + $0xa20] sm:$0xff]
        %v576 = vld [vmem:[%s209 + $0xa28] sm:$0xff]
        %v577 = vld [vmem:[%s209 + $0xa30] sm:$0xff]
        %v578 = vld [vmem:[%s209 + $0xa38] sm:$0xff]
        %v579 = vld [vmem:[%s209 + $0xa40] sm:$0xff]
        %v580 = vld [vmem:[%s209 + $0xa48] sm:$0xff]
        %v581 = vld [vmem:[%s209 + $0xa50] sm:$0xff]
        %v582 = vld [vmem:[%s209 + $0xa58] sm:$0xff]
        %v583 = vld [vmem:[%s209 + $0xa60] sm:$0xff]
        %v584 = vld [vmem:[%s209 + $0xa68] sm:$0xff]
        %v585 = vld [vmem:[%s209 + $0xa70] sm:$0xff]
        %v586 = vld [vmem:[%s209 + $0xa78] sm:$0xff]
        %v587 = vld [vmem:[%s209 + $0xa80] sm:$0xff]
        %v588 = vld [vmem:[%s209 + $0xa88] sm:$0xff]
        %v589 = vld [vmem:[%s209 + $0xa90] sm:$0xff]
        %v590 = vld [vmem:[%s209 + $0xa98] sm:$0xff]
        %v591 = vld [vmem:[%s209 + $0xaa0] sm:$0xff]
        %v592 = vld [vmem:[%s209 + $0xaa8] sm:$0xff]
        %v593 = vld [vmem:[%s209 + $0xab0] sm:$0xff]
        %v594 = vld [vmem:[%s209 + $0xab8] sm:$0xff]
        %v595 = vld [vmem:[%s209 + $0xac0] sm:$0xff]
        %v596 = vld [vmem:[%s209 + $0xac8] sm:$0xff]
        %v597 = vld [vmem:[%s209 + $0xad0] sm:$0xff]
        %v598 = vld [vmem:[%s209 + $0xad8] sm:$0xff]
        %v599 = vld [vmem:[%s209 + $0xae0] sm:$0xff]
        %v600 = vld [vmem:[%s209 + $0xae8] sm:$0xff]
        %v601 = vld [vmem:[%s209 + $0xaf0] sm:$0xff]
        %v602 = vld [vmem:[%s209 + $0xaf8] sm:$0xff]
        %v603 = vld [vmem:[%s209 + $0xb00] sm:$0xff]
        %v604 = vld [vmem:[%s209 + $0xb08] sm:$0xff]
        %v605 = vld [vmem:[%s209 + $0xb10] sm:$0xff]
        %v606 = vld [vmem:[%s209 + $0xb18] sm:$0xff]
        %v607 = vld [vmem:[%s209 + $0xb20] sm:$0xff]
        %v608 = vld [vmem:[%s209 + $0xb28] sm:$0xff]
        %v609 = vld [vmem:[%s209 + $0xb30] sm:$0xff]
        %v610 = vld [vmem:[%s209 + $0xb38] sm:$0xff]
        %v611 = vld [vmem:[%s209 + $0xb40] sm:$0xff]
        %v612 = vld [vmem:[%s209 + $0xb48] sm:$0xff]
        %v613 = vld [vmem:[%s209 + $0xb50] sm:$0xff]
        %v614 = vld [vmem:[%s209 + $0xb58] sm:$0xff]
        %v615 = vld [vmem:[%s209 + $0xb60] sm:$0xff]
        %v616 = vld [vmem:[%s209 + $0xb68] sm:$0xff]
        %v617 = vld [vmem:[%s209 + $0xb70] sm:$0xff]
        %v618 = vld [vmem:[%s209 + $0xb78] sm:$0xff]
        %v619 = vld [vmem:[%s209 + $0xb80] sm:$0xff]
        %v620 = vld [vmem:[%s209 + $0xb88] sm:$0xff]
        %v621 = vld [vmem:[%s209 + $0xb90] sm:$0xff]
        %v622 = vld [vmem:[%s209 + $0xb98] sm:$0xff]
        %v623 = vld [vmem:[%s209 + $0xba0] sm:$0xff]
        %v624 = vld [vmem:[%s209 + $0xba8] sm:$0xff]
        %v625 = vld [vmem:[%s209 + $0xbb0] sm:$0xff]
        %v626 = vld [vmem:[%s209 + $0xbb8] sm:$0xff]
        %v627 = vld [vmem:[%s209 + $0xbc0] sm:$0xff]
        %v628 = vld [vmem:[%s209 + $0xbc8] sm:$0xff]
        %v629 = vld [vmem:[%s209 + $0xbd0] sm:$0xff]
        %v630 = vld [vmem:[%s209 + $0xbd8] sm:$0xff]
        %v631 = vld [vmem:[%s209 + $0xbe0] sm:$0xff]
        %v632 = vld [vmem:[%s209 + $0xbe8] sm:$0xff]
        %v633 = vld [vmem:[%s209 + $0xbf0] sm:$0xff]
        %v634 = vld [vmem:[%s209 + $0xbf8] sm:$0xff]
        %v635 = vld [vmem:[%s209 + $0xc00] sm:$0xff]
        %v636 = vld [vmem:[%s209 + $0xc08] sm:$0xff]
        %v637 = vld [vmem:[%s209 + $0xc10] sm:$0xff]
        %v638 = vld [vmem:[%s209 + $0xc18] sm:$0xff]
        %v639 = vld [vmem:[%s209 + $0xc20] sm:$0xff]
        %v640 = vld [vmem:[%s209 + $0xc28] sm:$0xff]
        %v641 = vld [vmem:[%s209 + $0xc30] sm:$0xff]
        %v642 = vld [vmem:[%s209 + $0xc38] sm:$0xff]
        %v643 = vld [vmem:[%s209 + $0xc40] sm:$0xff]
        %v644 = vld [vmem:[%s209 + $0xc48] sm:$0xff]
        %v645 = vld [vmem:[%s209 + $0xc50] sm:$0xff]
        %v646 = vld [vmem:[%s209 + $0xc58] sm:$0xff]
        %v647 = vld [vmem:[%s209 + $0xc60] sm:$0xff]
        %v648 = vld [vmem:[%s209 + $0xc68] sm:$0xff]
        %v649 = vld [vmem:[%s209 + $0xc70] sm:$0xff]
        %v650 = vld [vmem:[%s209 + $0xc78] sm:$0xff]
        %v651 = vld [vmem:[%s209 + $0xc80] sm:$0xff]
        %v652 = vld [vmem:[%s209 + $0xc88] sm:$0xff]
        %v653 = vld [vmem:[%s209 + $0xc90] sm:$0xff]
        %v654 = vld [vmem:[%s209 + $0xc98] sm:$0xff]
        %v655 = vld [vmem:[%s209 + $0xca0] sm:$0xff]
        %v656 = vld [vmem:[%s209 + $0xca8] sm:$0xff]
        %v657 = vld [vmem:[%s209 + $0xcb0] sm:$0xff]
        %v658 = vld [vmem:[%s209 + $0xcb8] sm:$0xff]
        %v659 = vld [vmem:[%s209 + $0xcc0] sm:$0xff]
        %v660 = vld [vmem:[%s209 + $0xcc8] sm:$0xff]
        %v661 = vld [vmem:[%s209 + $0xcd0] sm:$0xff]
        %v662 = vld [vmem:[%s209 + $0xcd8] sm:$0xff]
        %v663 = vld [vmem:[%s209 + $0xce0] sm:$0xff]
        %v664 = vld [vmem:[%s209 + $0xce8] sm:$0xff]
        %v665 = vld [vmem:[%s209 + $0xcf0] sm:$0xff]
        %v666 = vld [vmem:[%s209 + $0xcf8] sm:$0xff]
        %v667 = vld [vmem:[%s209 + $0xd00] sm:$0xff]
        %v668 = vld [vmem:[%s209 + $0xd08] sm:$0xff]
        %v669 = vld [vmem:[%s209 + $0xd10] sm:$0xff]
        %v670 = vld [vmem:[%s209 + $0xd18] sm:$0xff]
        %v671 = vld [vmem:[%s209 + $0xd20] sm:$0xff]
        %v672 = vld [vmem:[%s209 + $0xd28] sm:$0xff]
        %v673 = vld [vmem:[%s209 + $0xd30] sm:$0xff]
        %v674 = vld [vmem:[%s209 + $0xd38] sm:$0xff]
        %v675 = vld [vmem:[%s209 + $0xd40] sm:$0xff]
        %v676 = vld [vmem:[%s209 + $0xd48] sm:$0xff]
        %v677 = vld [vmem:[%s209 + $0xd50] sm:$0xff]
        %v678 = vld [vmem:[%s209 + $0xd58] sm:$0xff]
        %v679 = vld [vmem:[%s209 + $0xd60] sm:$0xff]
        %v680 = vld [vmem:[%s209 + $0xd68] sm:$0xff]
        %v681 = vld [vmem:[%s209 + $0xd70] sm:$0xff]
        %v682 = vld [vmem:[%s209 + $0xd78] sm:$0xff]
        %v683 = vld [vmem:[%s209 + $0xd80] sm:$0xff]
        %v684 = vld [vmem:[%s209 + $0xd88] sm:$0xff]
        %v685 = vld [vmem:[%s209 + $0xd90] sm:$0xff]
        %v686 = vld [vmem:[%s209 + $0xd98] sm:$0xff]
        %v687 = vld [vmem:[%s209 + $0xda0] sm:$0xff]
        %v688 = vld [vmem:[%s209 + $0xda8] sm:$0xff]
        %v689 = vld [vmem:[%s209 + $0xdb0] sm:$0xff]
        %v690 = vld [vmem:[%s209 + $0xdb8] sm:$0xff]
        %v691 = vld [vmem:[%s209 + $0xdc0] sm:$0xff]
        %v692 = vld [vmem:[%s209 + $0xdc8] sm:$0xff]
        %v693 = vld [vmem:[%s209 + $0xdd0] sm:$0xff]
        %v694 = vld [vmem:[%s209 + $0xdd8] sm:$0xff]
        %v695 = vld [vmem:[%s209 + $0xde0] sm:$0xff]
        %v696 = vld [vmem:[%s209 + $0xde8] sm:$0xff]
        %v697 = vld [vmem:[%s209 + $0xdf0] sm:$0xff]
        %v698 = vld [vmem:[%s209 + $0xdf8] sm:$0xff]
        %v699 = vld [vmem:[%s209 + $0xe00] sm:$0xff]
        %v700 = vld [vmem:[%s209 + $0xe08] sm:$0xff]
        %v701 = vld [vmem:[%s209 + $0xe10] sm:$0xff]
        %v702 = vld [vmem:[%s209 + $0xe18] sm:$0xff]
        %v703 = vld [vmem:[%s209 + $0xe20] sm:$0xff]
        %v704 = vld [vmem:[%s209 + $0xe28] sm:$0xff]
        %v705 = vld [vmem:[%s209 + $0xe30] sm:$0xff]
        %v706 = vld [vmem:[%s209 + $0xe38] sm:$0xff]
        %v707 = vld [vmem:[%s209 + $0xe40] sm:$0xff]
        %v708 = vld [vmem:[%s209 + $0xe48] sm:$0xff]
        %v709 = vld [vmem:[%s209 + $0xe50] sm:$0xff]
        %v710 = vld [vmem:[%s209 + $0xe58] sm:$0xff]
        %v711 = vld [vmem:[%s209 + $0xe60] sm:$0xff]
        %v712 = vld [vmem:[%s209 + $0xe68] sm:$0xff]
        %v713 = vld [vmem:[%s209 + $0xe70] sm:$0xff]
        %v714 = vld [vmem:[%s209 + $0xe78] sm:$0xff]
        %v715 = vld [vmem:[%s209 + $0xe80] sm:$0xff]
        %v716 = vld [vmem:[%s209 + $0xe88] sm:$0xff]
        %v717 = vld [vmem:[%s209 + $0xe90] sm:$0xff]
        %v718 = vld [vmem:[%s209 + $0xe98] sm:$0xff]
        %v719 = vld [vmem:[%s209 + $0xea0] sm:$0xff]
        %v720 = vld [vmem:[%s209 + $0xea8] sm:$0xff]
        %v721 = vld [vmem:[%s209 + $0xeb0] sm:$0xff]
        %v722 = vld [vmem:[%s209 + $0xeb8] sm:$0xff]
        %v723 = vld [vmem:[%s209 + $0xec0] sm:$0xff]
        %v724 = vld [vmem:[%s209 + $0xec8] sm:$0xff]
        %v725 = vld [vmem:[%s209 + $0xed0] sm:$0xff]
        %v726 = vld [vmem:[%s209 + $0xed8] sm:$0xff]
        %v727 = vld [vmem:[%s209 + $0xee0] sm:$0xff]
        %v728 = vld [vmem:[%s209 + $0xee8] sm:$0xff]
        %v729 = vld [vmem:[%s209 + $0xef0] sm:$0xff]
        %v730 = vld [vmem:[%s209 + $0xef8] sm:$0xff]
        %v731 = vld [vmem:[%s209 + $0xf00] sm:$0xff]
        %v732 = vld [vmem:[%s209 + $0xf08] sm:$0xff]
        %v733 = vld [vmem:[%s209 + $0xf10] sm:$0xff]
        %v734 = vld [vmem:[%s209 + $0xf18] sm:$0xff]
        %v735 = vld [vmem:[%s209 + $0xf20] sm:$0xff]
        %v736 = vld [vmem:[%s209 + $0xf28] sm:$0xff]
        %v737 = vld [vmem:[%s209 + $0xf30] sm:$0xff]
        %v738 = vld [vmem:[%s209 + $0xf38] sm:$0xff]
        %v739 = vld [vmem:[%s209 + $0xf40] sm:$0xff]
        %v740 = vld [vmem:[%s209 + $0xf48] sm:$0xff]
        %v741 = vld [vmem:[%s209 + $0xf50] sm:$0xff]
        %v742 = vld [vmem:[%s209 + $0xf58] sm:$0xff]
        %v743 = vld [vmem:[%s209 + $0xf60] sm:$0xff]
        %v744 = vld [vmem:[%s209 + $0xf68] sm:$0xff]
        %v745 = vld [vmem:[%s209 + $0xf70] sm:$0xff]
        %v746 = vld [vmem:[%s209 + $0xf78] sm:$0xff]
        %v747 = vld [vmem:[%s209 + $0xf80] sm:$0xff]
        %v748 = vld [vmem:[%s209 + $0xf88] sm:$0xff]
        %v749 = vld [vmem:[%s209 + $0xf90] sm:$0xff]
        %v750 = vld [vmem:[%s209 + $0xf98] sm:$0xff]
        %v751 = vld [vmem:[%s209 + $0xfa0] sm:$0xff]
        %v752 = vld [vmem:[%s209 + $0xfa8] sm:$0xff]
        %v753 = vld [vmem:[%s209 + $0xfb0] sm:$0xff]
        %v754 = vld [vmem:[%s209 + $0xfb8] sm:$0xff]
        %v755 = vld [vmem:[%s209 + $0xfc0] sm:$0xff]
        %v756 = vld [vmem:[%s209 + $0xfc8] sm:$0xff]
        %v757 = vld [vmem:[%s209 + $0xfd0] sm:$0xff]
        %v758 = vld [vmem:[%s209 + $0xfd8] sm:$0xff]
        %v759 = vld [vmem:[%s209 + $0xfe0] sm:$0xff]
        %v760 = vld [vmem:[%s209 + $0xfe8] sm:$0xff]
        %v761 = vld [vmem:[%s209 + $0xff0] sm:$0xff]
        %v762 = vld [vmem:[%s209 + $0xff8] sm:$0xff]
        %v764 = vlaneseq
        %v765 = vshrl.u32 %v764, 7
        %v766 = vsub.s32 0, %v765
        %v767 = vrot.slane %v242, %v766
        %v768 = vlaneseq
        %v769 = vshrl.u32 %v768, 7
        %v770 = vsub.s32 1, %v769
        %v771 = vrot.slane %v242, %v770
        %v772 = vlaneseq
        %v773 = vshrl.u32 %v772, 7
        %v774 = vsub.s32 2, %v773
        %v775 = vrot.slane %v242, %v774
        %v776 = vlaneseq
        %v777 = vshrl.u32 %v776, 7
        %v778 = vsub.s32 3, %v777
        %v779 = vrot.slane %v242, %v778
        %784 = vmatprep.subr.mxu0 %v252
        %785 = vmatpush1.msra.mxu0 %v251
        %786 = vmatprep.subr.mxu0 %v256
        %787 = vmatpush1.msra.mxu0 %v255
        %788 = vmatprep.subr.mxu0 %v260
        %789 = vmatpush1.msra.mxu0 %v259
        %790 = vmatprep.subr.mxu0 %v264
        %791 = vmatpush1.msra.mxu0 %v263
        %792 = vmatprep.subr.mxu0 %v268
        %793 = vmatpush1.msra.mxu0 %v267
        %794 = vmatprep.subr.mxu0 %v272
        %795 = vmatpush1.msra.mxu0 %v271
        %796 = vmatprep.subr.mxu0 %v276
        %797 = vmatpush1.msra.mxu0 %v275
        %798 = vmatprep.subr.mxu0 %v280
        %799 = vmatpush1.msra.mxu0 %v279
        %800 = vmatprep.subr.mxu0 %v284
        %801 = vmatpush1.msra.mxu0 %v283
        %802 = vmatprep.subr.mxu0 %v288
        %803 = vmatpush1.msra.mxu0 %v287
        %804 = vmatprep.subr.mxu0 %v292
        %805 = vmatpush1.msra.mxu0 %v291
        %806 = vmatprep.subr.mxu0 %v296
        %807 = vmatpush1.msra.mxu0 %v295
        %808 = vmatprep.subr.mxu0 %v300
        %809 = vmatpush1.msra.mxu0 %v299
        %810 = vmatprep.subr.mxu0 %v304
        %811 = vmatpush1.msra.mxu0 %v303
        %812 = vmatprep.subr.mxu0 %v308
        %813 = vmatpush1.msra.mxu0 %v307
        %814 = vmatprep.subr.mxu0 %v312
        %815 = vmatpush1.msra.mxu0 %v311
        %816 = vmatprep.subr.mxu0 %v316
        %817 = vmatpush1.msra.mxu0 %v315
        %818 = vmatprep.subr.mxu0 %v320
        %819 = vmatpush1.msra.mxu0 %v319
        %820 = vmatprep.subr.mxu0 %v324
        %821 = vmatpush1.msra.mxu0 %v323
        %822 = vmatprep.subr.mxu0 %v328
        %823 = vmatpush1.msra.mxu0 %v327
        %824 = vmatprep.subr.mxu0 %v332
        %825 = vmatpush1.msra.mxu0 %v331
        %826 = vmatprep.subr.mxu0 %v336
        %827 = vmatpush1.msra.mxu0 %v335
        %828 = vmatprep.subr.mxu0 %v340
        %829 = vmatpush1.msra.mxu0 %v339
        %830 = vmatprep.subr.mxu0 %v344
        %831 = vmatpush1.msra.mxu0 %v343
        %832 = vmatprep.subr.mxu0 %v348
        %833 = vmatpush1.msra.mxu0 %v347
        %834 = vmatprep.subr.mxu0 %v352
        %835 = vmatpush1.msra.mxu0 %v351
        %836 = vmatprep.subr.mxu0 %v356
        %837 = vmatpush1.msra.mxu0 %v355
        %838 = vmatprep.subr.mxu0 %v360
        %839 = vmatpush1.msra.mxu0 %v359
        %840 = vmatprep.subr.mxu0 %v364
        %841 = vmatpush1.msra.mxu0 %v363
        %842 = vmatprep.subr.mxu0 %v368
        %843 = vmatpush1.msra.mxu0 %v367
        %844 = vmatprep.subr.mxu0 %v372
        %845 = vmatpush1.msra.mxu0 %v371
        %846 = vmatprep.subr.mxu0 %v376
        %847 = vmatpush1.msra.mxu0 %v375
        %848 = vmatprep.mubr.f32.mxu0 %v244
        %849 = vmatmul.mubr.f32.gmra.mrb[0].mxu0 %v243
        %v850 = vpop.f32.mrb[0].mxu0
        %v851 = vadd.f32 %v767, %v850
        %v852 = vpop.f32.mrb[0].mxu0
        %v853 = vadd.f32 %v771, %v852
        %854 = vdwg.mxu0
        %855 = vmatprep.subr.mxu0 %v380
        %856 = vmatpush1.msra.mxu0 %v379
        %857 = vmatprep.subr.mxu0 %v384
        %858 = vmatpush1.msra.mxu0 %v383
        %859 = vmatprep.subr.mxu0 %v388
        %860 = vmatpush1.msra.mxu0 %v387
        %861 = vmatprep.subr.mxu0 %v392
        %862 = vmatpush1.msra.mxu0 %v391
        %863 = vmatprep.subr.mxu0 %v396
        %864 = vmatpush1.msra.mxu0 %v395
        %865 = vmatprep.subr.mxu0 %v400
        %866 = vmatpush1.msra.mxu0 %v399
        %867 = vmatprep.subr.mxu0 %v404
        %868 = vmatpush1.msra.mxu0 %v403
        %869 = vmatprep.subr.mxu0 %v408
        %870 = vmatpush1.msra.mxu0 %v407
        %871 = vmatprep.subr.mxu0 %v412
        %872 = vmatpush1.msra.mxu0 %v411
        %873 = vmatprep.subr.mxu0 %v416
        %874 = vmatpush1.msra.mxu0 %v415
        %875 = vmatprep.subr.mxu0 %v420
        %876 = vmatpush1.msra.mxu0 %v419
        %877 = vmatprep.subr.mxu0 %v424
        %878 = vmatpush1.msra.mxu0 %v423
        %879 = vmatprep.subr.mxu0 %v428
        %880 = vmatpush1.msra.mxu0 %v427
        %881 = vmatprep.subr.mxu0 %v432
        %882 = vmatpush1.msra.mxu0 %v431
        %883 = vmatprep.subr.mxu0 %v436
        %884 = vmatpush1.msra.mxu0 %v435
        %885 = vmatprep.subr.mxu0 %v440
        %886 = vmatpush1.msra.mxu0 %v439
        %887 = vmatprep.subr.mxu0 %v444
        %888 = vmatpush1.msra.mxu0 %v443
        %889 = vmatprep.subr.mxu0 %v448
        %890 = vmatpush1.msra.mxu0 %v447
        %891 = vmatprep.subr.mxu0 %v452
        %892 = vmatpush1.msra.mxu0 %v451
        %893 = vmatprep.subr.mxu0 %v456
        %894 = vmatpush1.msra.mxu0 %v455
        %895 = vmatprep.subr.mxu0 %v460
        %896 = vmatpush1.msra.mxu0 %v459
        %897 = vmatprep.subr.mxu0 %v464
        %898 = vmatpush1.msra.mxu0 %v463
        %899 = vmatprep.subr.mxu0 %v468
        %900 = vmatpush1.msra.mxu0 %v467
        %901 = vmatprep.subr.mxu0 %v472
        %902 = vmatpush1.msra.mxu0 %v471
        %903 = vmatprep.subr.mxu0 %v476
        %904 = vmatpush1.msra.mxu0 %v475
        %905 = vmatprep.subr.mxu0 %v480
        %906 = vmatpush1.msra.mxu0 %v479
        %907 = vmatprep.subr.mxu0 %v484
        %908 = vmatpush1.msra.mxu0 %v483
        %909 = vmatprep.subr.mxu0 %v488
        %910 = vmatpush1.msra.mxu0 %v487
        %911 = vmatprep.subr.mxu0 %v492
        %912 = vmatpush1.msra.mxu0 %v491
        %913 = vmatprep.subr.mxu0 %v496
        %914 = vmatpush1.msra.mxu0 %v495
        %915 = vmatprep.subr.mxu0 %v500
        %916 = vmatpush1.msra.mxu0 %v499
        %917 = vmatprep.subr.mxu0 %v504
        %918 = vmatpush1.msra.mxu0 %v503
        %919 = vmatprep.mubr.f32.mxu0 %v246
        %920 = vmatmul.mubr.f32.gmra.mrb[0].mxu0 %v245
        %v921 = vpop.f32.mrb[0].mxu0
        %v922 = vadd.f32 %v851, %v921
        %v923 = vpop.f32.mrb[0].mxu0
        %v924 = vadd.f32 %v853, %v923
        %925 = vdwg.mxu0
        %926 = vmatprep.subr.mxu0 %v508
        %927 = vmatpush1.msra.mxu0 %v507
        %928 = vmatprep.subr.mxu0 %v512
        %929 = vmatpush1.msra.mxu0 %v511
        %930 = vmatprep.subr.mxu0 %v516
        %931 = vmatpush1.msra.mxu0 %v515
        %932 = vmatprep.subr.mxu0 %v520
        %933 = vmatpush1.msra.mxu0 %v519
        %934 = vmatprep.subr.mxu0 %v524
        %935 = vmatpush1.msra.mxu0 %v523
        %936 = vmatprep.subr.mxu0 %v528
        %937 = vmatpush1.msra.mxu0 %v527
        %938 = vmatprep.subr.mxu0 %v532
        %939 = vmatpush1.msra.mxu0 %v531
        %940 = vmatprep.subr.mxu0 %v536
        %941 = vmatpush1.msra.mxu0 %v535
        %942 = vmatprep.subr.mxu0 %v540
        %943 = vmatpush1.msra.mxu0 %v539
        %944 = vmatprep.subr.mxu0 %v544
        %945 = vmatpush1.msra.mxu0 %v543
        %946 = vmatprep.subr.mxu0 %v548
        %947 = vmatpush1.msra.mxu0 %v547
        %948 = vmatprep.subr.mxu0 %v552
        %949 = vmatpush1.msra.mxu0 %v551
        %950 = vmatprep.subr.mxu0 %v556
        %951 = vmatpush1.msra.mxu0 %v555
        %952 = vmatprep.subr.mxu0 %v560
        %953 = vmatpush1.msra.mxu0 %v559
        %954 = vmatprep.subr.mxu0 %v564
        %955 = vmatpush1.msra.mxu0 %v563
        %956 = vmatprep.subr.mxu0 %v568
        %957 = vmatpush1.msra.mxu0 %v567
        %958 = vmatprep.subr.mxu0 %v572
        %959 = vmatpush1.msra.mxu0 %v571
        %960 = vmatprep.subr.mxu0 %v576
        %961 = vmatpush1.msra.mxu0 %v575
        %962 = vmatprep.subr.mxu0 %v580
        %963 = vmatpush1.msra.mxu0 %v579
        %964 = vmatprep.subr.mxu0 %v584
        %965 = vmatpush1.msra.mxu0 %v583
        %966 = vmatprep.subr.mxu0 %v588
        %967 = vmatpush1.msra.mxu0 %v587
        %968 = vmatprep.subr.mxu0 %v592
        %969 = vmatpush1.msra.mxu0 %v591
        %970 = vmatprep.subr.mxu0 %v596
        %971 = vmatpush1.msra.mxu0 %v595
        %972 = vmatprep.subr.mxu0 %v600
        %973 = vmatpush1.msra.mxu0 %v599
        %974 = vmatprep.subr.mxu0 %v604
        %975 = vmatpush1.msra.mxu0 %v603
        %976 = vmatprep.subr.mxu0 %v608
        %977 = vmatpush1.msra.mxu0 %v607
        %978 = vmatprep.subr.mxu0 %v612
        %979 = vmatpush1.msra.mxu0 %v611
        %980 = vmatprep.subr.mxu0 %v616
        %981 = vmatpush1.msra.mxu0 %v615
        %982 = vmatprep.subr.mxu0 %v620
        %983 = vmatpush1.msra.mxu0 %v619
        %984 = vmatprep.subr.mxu0 %v624
        %985 = vmatpush1.msra.mxu0 %v623
        %986 = vmatprep.subr.mxu0 %v628
        %987 = vmatpush1.msra.mxu0 %v627
        %988 = vmatprep.subr.mxu0 %v632
        %989 = vmatpush1.msra.mxu0 %v631
        %990 = vmatprep.mubr.f32.mxu0 %v248
        %991 = vmatmul.mubr.f32.gmra.mrb[0].mxu0 %v247
        %v992 = vpop.f32.mrb[0].mxu0
        %v993 = vadd.f32 %v922, %v992
        %v994 = vpop.f32.mrb[0].mxu0
        %v995 = vadd.f32 %v924, %v994
        %996 = vdwg.mxu0
        %997 = vmatprep.subr.mxu0 %v636
        %998 = vmatpush1.msra.mxu0 %v635
        %999 = vmatprep.subr.mxu0 %v640
        %1000 = vmatpush1.msra.mxu0 %v639
        %1001 = vmatprep.subr.mxu0 %v644
        %1002 = vmatpush1.msra.mxu0 %v643
        %1003 = vmatprep.subr.mxu0 %v648
        %1004 = vmatpush1.msra.mxu0 %v647
        %1005 = vmatprep.subr.mxu0 %v652
        %1006 = vmatpush1.msra.mxu0 %v651
        %1007 = vmatprep.subr.mxu0 %v656
        %1008 = vmatpush1.msra.mxu0 %v655
        %1009 = vmatprep.subr.mxu0 %v660
        %1010 = vmatpush1.msra.mxu0 %v659
        %1011 = vmatprep.subr.mxu0 %v664
        %1012 = vmatpush1.msra.mxu0 %v663
        %1013 = vmatprep.subr.mxu0 %v668
        %1014 = vmatpush1.msra.mxu0 %v667
        %1015 = vmatprep.subr.mxu0 %v672
        %1016 = vmatpush1.msra.mxu0 %v671
        %1017 = vmatprep.subr.mxu0 %v676
        %1018 = vmatpush1.msra.mxu0 %v675
        %1019 = vmatprep.subr.mxu0 %v680
        %1020 = vmatpush1.msra.mxu0 %v679
        %1021 = vmatprep.subr.mxu0 %v684
        %1022 = vmatpush1.msra.mxu0 %v683
        %1023 = vmatprep.subr.mxu0 %v688
        %1024 = vmatpush1.msra.mxu0 %v687
        %1025 = vmatprep.subr.mxu0 %v692
        %1026 = vmatpush1.msra.mxu0 %v691
        %1027 = vmatprep.subr.mxu0 %v696
        %1028 = vmatpush1.msra.mxu0 %v695
        %1029 = vmatprep.subr.mxu0 %v700
        %1030 = vmatpush1.msra.mxu0 %v699
        %1031 = vmatprep.subr.mxu0 %v704
        %1032 = vmatpush1.msra.mxu0 %v703
        %1033 = vmatprep.subr.mxu0 %v708
        %1034 = vmatpush1.msra.mxu0 %v707
        %1035 = vmatprep.subr.mxu0 %v712
        %1036 = vmatpush1.msra.mxu0 %v711
        %1037 = vmatprep.subr.mxu0 %v716
        %1038 = vmatpush1.msra.mxu0 %v715
        %1039 = vmatprep.subr.mxu0 %v720
        %1040 = vmatpush1.msra.mxu0 %v719
        %1041 = vmatprep.subr.mxu0 %v724
        %1042 = vmatpush1.msra.mxu0 %v723
        %1043 = vmatprep.subr.mxu0 %v728
        %1044 = vmatpush1.msra.mxu0 %v727
        %1045 = vmatprep.subr.mxu0 %v732
        %1046 = vmatpush1.msra.mxu0 %v731
        %1047 = vmatprep.subr.mxu0 %v736
        %1048 = vmatpush1.msra.mxu0 %v735
        %1049 = vmatprep.subr.mxu0 %v740
        %1050 = vmatpush1.msra.mxu0 %v739
        %1051 = vmatprep.subr.mxu0 %v744
        %1052 = vmatpush1.msra.mxu0 %v743
        %1053 = vmatprep.subr.mxu0 %v748
        %1054 = vmatpush1.msra.mxu0 %v747
        %1055 = vmatprep.subr.mxu0 %v752
        %1056 = vmatpush1.msra.mxu0 %v751
        %1057 = vmatprep.subr.mxu0 %v756
        %1058 = vmatpush1.msra.mxu0 %v755
        %1059 = vmatprep.subr.mxu0 %v760
        %1060 = vmatpush1.msra.mxu0 %v759
        %1061 = vmatprep.mubr.f32.mxu0 %v250
        %1062 = vmatmul.mubr.f32.gmra.mrb[0].mxu0 %v249
        %v1063 = vpop.f32.mrb[0].mxu0
        %v1064 = vadd.f32 %v993, %v1063
        %v1065 = vpop.f32.mrb[0].mxu0
        %v1066 = vadd.f32 %v995, %v1065
        %1067 = vdwg.mxu0
        %1068 = vmatprep.subr.mxu0 %v254
        %1069 = vmatpush1.msra.mxu0 %v253
        %1070 = vmatprep.subr.mxu0 %v258
        %1071 = vmatpush1.msra.mxu0 %v257
        %1072 = vmatprep.subr.mxu0 %v262
        %1073 = vmatpush1.msra.mxu0 %v261
        %1074 = vmatprep.subr.mxu0 %v266
        %1075 = vmatpush1.msra.mxu0 %v265
        %1076 = vmatprep.subr.mxu0 %v270
        %1077 = vmatpush1.msra.mxu0 %v269
        %1078 = vmatprep.subr.mxu0 %v274
        %1079 = vmatpush1.msra.mxu0 %v273
        %1080 = vmatprep.subr.mxu0 %v278
        %1081 = vmatpush1.msra.mxu0 %v277
        %1082 = vmatprep.subr.mxu0 %v282
        %1083 = vmatpush1.msra.mxu0 %v281
        %1084 = vmatprep.subr.mxu0 %v286
        %1085 = vmatpush1.msra.mxu0 %v285
        %1086 = vmatprep.subr.mxu0 %v290
        %1087 = vmatpush1.msra.mxu0 %v289
        %1088 = vmatprep.subr.mxu0 %v294
        %1089 = vmatpush1.msra.mxu0 %v293
        %1090 = vmatprep.subr.mxu0 %v298
        %1091 = vmatpush1.msra.mxu0 %v297
        %1092 = vmatprep.subr.mxu0 %v302
        %1093 = vmatpush1.msra.mxu0 %v301
        %1094 = vmatprep.subr.mxu0 %v306
        %1095 = vmatpush1.msra.mxu0 %v305
        %1096 = vmatprep.subr.mxu0 %v310
        %1097 = vmatpush1.msra.mxu0 %v309
        %1098 = vmatprep.subr.mxu0 %v314
        %1099 = vmatpush1.msra.mxu0 %v313
        %1100 = vmatprep.subr.mxu0 %v318
        %1101 = vmatpush1.msra.mxu0 %v317
        %1102 = vmatprep.subr.mxu0 %v322
        %1103 = vmatpush1.msra.mxu0 %v321
        %1104 = vmatprep.subr.mxu0 %v326
        %1105 = vmatpush1.msra.mxu0 %v325
        %1106 = vmatprep.subr.mxu0 %v330
        %1107 = vmatpush1.msra.mxu0 %v329
        %1108 = vmatprep.subr.mxu0 %v334
        %1109 = vmatpush1.msra.mxu0 %v333
        %1110 = vmatprep.subr.mxu0 %v338
        %1111 = vmatpush1.msra.mxu0 %v337
        %1112 = vmatprep.subr.mxu0 %v342
        %1113 = vmatpush1.msra.mxu0 %v341
        %1114 = vmatprep.subr.mxu0 %v346
        %1115 = vmatpush1.msra.mxu0 %v345
        %1116 = vmatprep.subr.mxu0 %v350
        %1117 = vmatpush1.msra.mxu0 %v349
        %1118 = vmatprep.subr.mxu0 %v354
        %1119 = vmatpush1.msra.mxu0 %v353
        %1120 = vmatprep.subr.mxu0 %v358
        %1121 = vmatpush1.msra.mxu0 %v357
        %1122 = vmatprep.subr.mxu0 %v362
        %1123 = vmatpush1.msra.mxu0 %v361
        %1124 = vmatprep.subr.mxu0 %v366
        %1125 = vmatpush1.msra.mxu0 %v365
        %1126 = vmatprep.subr.mxu0 %v370
        %1127 = vmatpush1.msra.mxu0 %v369
        %1128 = vmatprep.subr.mxu0 %v374
        %1129 = vmatpush1.msra.mxu0 %v373
        %1130 = vmatprep.subr.mxu0 %v378
        %1131 = vmatpush1.msra.mxu0 %v377
        %1132 = vmatprep.mubr.f32.mxu0 %v244
        %1133 = vmatmul.mubr.f32.gmra.mrb[0].mxu0 %v243
        %v1134 = vpop.f32.mrb[0].mxu0
        %v1135 = vadd.f32 %v775, %v1134
        %v1136 = vpop.f32.mrb[0].mxu0
        %v1137 = vadd.f32 %v779, %v1136
        %1138 = vdwg.mxu0
        %1139 = vmatprep.subr.mxu0 %v382
        %1140 = vmatpush1.msra.mxu0 %v381
        %1141 = vmatprep.subr.mxu0 %v386
        %1142 = vmatpush1.msra.mxu0 %v385
        %1143 = vmatprep.subr.mxu0 %v390
        %1144 = vmatpush1.msra.mxu0 %v389
        %1145 = vmatprep.subr.mxu0 %v394
        %1146 = vmatpush1.msra.mxu0 %v393
        %1147 = vmatprep.subr.mxu0 %v398
        %1148 = vmatpush1.msra.mxu0 %v397
        %1149 = vmatprep.subr.mxu0 %v402
        %1150 = vmatpush1.msra.mxu0 %v401
        %1151 = vmatprep.subr.mxu0 %v406
        %1152 = vmatpush1.msra.mxu0 %v405
        %1153 = vmatprep.subr.mxu0 %v410
        %1154 = vmatpush1.msra.mxu0 %v409
        %1155 = vmatprep.subr.mxu0 %v414
        %1156 = vmatpush1.msra.mxu0 %v413
        %1157 = vmatprep.subr.mxu0 %v418
        %1158 = vmatpush1.msra.mxu0 %v417
        %1159 = vmatprep.subr.mxu0 %v422
        %1160 = vmatpush1.msra.mxu0 %v421
        %1161 = vmatprep.subr.mxu0 %v426
        %1162 = vmatpush1.msra.mxu0 %v425
        %1163 = vmatprep.subr.mxu0 %v430
        %1164 = vmatpush1.msra.mxu0 %v429
        %1165 = vmatprep.subr.mxu0 %v434
        %1166 = vmatpush1.msra.mxu0 %v433
        %1167 = vmatprep.subr.mxu0 %v438
        %1168 = vmatpush1.msra.mxu0 %v437
        %1169 = vmatprep.subr.mxu0 %v442
        %1170 = vmatpush1.msra.mxu0 %v441
        %1171 = vmatprep.subr.mxu0 %v446
        %1172 = vmatpush1.msra.mxu0 %v445
        %1173 = vmatprep.subr.mxu0 %v450
        %1174 = vmatpush1.msra.mxu0 %v449
        %1175 = vmatprep.subr.mxu0 %v454
        %1176 = vmatpush1.msra.mxu0 %v453
        %1177 = vmatprep.subr.mxu0 %v458
        %1178 = vmatpush1.msra.mxu0 %v457
        %1179 = vmatprep.subr.mxu0 %v462
        %1180 = vmatpush1.msra.mxu0 %v461
        %1181 = vmatprep.subr.mxu0 %v466
        %1182 = vmatpush1.msra.mxu0 %v465
        %1183 = vmatprep.subr.mxu0 %v470
        %1184 = vmatpush1.msra.mxu0 %v469
        %1185 = vmatprep.subr.mxu0 %v474
        %1186 = vmatpush1.msra.mxu0 %v473
        %1187 = vmatprep.subr.mxu0 %v478
        %1188 = vmatpush1.msra.mxu0 %v477
        %1189 = vmatprep.subr.mxu0 %v482
        %1190 = vmatpush1.msra.mxu0 %v481
        %1191 = vmatprep.subr.mxu0 %v486
        %1192 = vmatpush1.msra.mxu0 %v485
        %1193 = vmatprep.subr.mxu0 %v490
        %1194 = vmatpush1.msra.mxu0 %v489
        %1195 = vmatprep.subr.mxu0 %v494
        %1196 = vmatpush1.msra.mxu0 %v493
        %1197 = vmatprep.subr.mxu0 %v498
        %1198 = vmatpush1.msra.mxu0 %v497
        %1199 = vmatprep.subr.mxu0 %v502
        %1200 = vmatpush1.msra.mxu0 %v501
        %1201 = vmatprep.subr.mxu0 %v506
        %1202 = vmatpush1.msra.mxu0 %v505
        %1203 = vmatprep.mubr.f32.mxu0 %v246
        %1204 = vmatmul.mubr.f32.gmra.mrb[0].mxu0 %v245
        %v1205 = vpop.f32.mrb[0].mxu0
        %v1206 = vadd.f32 %v1135, %v1205
        %v1207 = vpop.f32.mrb[0].mxu0
        %v1208 = vadd.f32 %v1137, %v1207
        %1209 = vdwg.mxu0
        %1210 = vmatprep.subr.mxu0 %v510
        %1211 = vmatpush1.msra.mxu0 %v509
        %1212 = vmatprep.subr.mxu0 %v514
        %1213 = vmatpush1.msra.mxu0 %v513
        %1214 = vmatprep.subr.mxu0 %v518
        %1215 = vmatpush1.msra.mxu0 %v517
        %1216 = vmatprep.subr.mxu0 %v522
        %1217 = vmatpush1.msra.mxu0 %v521
        %1218 = vmatprep.subr.mxu0 %v526
        %1219 = vmatpush1.msra.mxu0 %v525
        %1220 = vmatprep.subr.mxu0 %v530
        %1221 = vmatpush1.msra.mxu0 %v529
        %1222 = vmatprep.subr.mxu0 %v534
        %1223 = vmatpush1.msra.mxu0 %v533
        %1224 = vmatprep.subr.mxu0 %v538
        %1225 = vmatpush1.msra.mxu0 %v537
        %1226 = vmatprep.subr.mxu0 %v542
        %1227 = vmatpush1.msra.mxu0 %v541
        %1228 = vmatprep.subr.mxu0 %v546
        %1229 = vmatpush1.msra.mxu0 %v545
        %1230 = vmatprep.subr.mxu0 %v550
        %1231 = vmatpush1.msra.mxu0 %v549
        %1232 = vmatprep.subr.mxu0 %v554
        %1233 = vmatpush1.msra.mxu0 %v553
        %1234 = vmatprep.subr.mxu0 %v558
        %1235 = vmatpush1.msra.mxu0 %v557
        %1236 = vmatprep.subr.mxu0 %v562
        %1237 = vmatpush1.msra.mxu0 %v561
        %1238 = vmatprep.subr.mxu0 %v566
        %1239 = vmatpush1.msra.mxu0 %v565
        %1240 = vmatprep.subr.mxu0 %v570
        %1241 = vmatpush1.msra.mxu0 %v569
        %1242 = vmatprep.subr.mxu0 %v574
        %1243 = vmatpush1.msra.mxu0 %v573
        %1244 = vmatprep.subr.mxu0 %v578
        %1245 = vmatpush1.msra.mxu0 %v577
        %1246 = vmatprep.subr.mxu0 %v582
        %1247 = vmatpush1.msra.mxu0 %v581
        %1248 = vmatprep.subr.mxu0 %v586
        %1249 = vmatpush1.msra.mxu0 %v585
        %1250 = vmatprep.subr.mxu0 %v590
        %1251 = vmatpush1.msra.mxu0 %v589
        %1252 = vmatprep.subr.mxu0 %v594
        %1253 = vmatpush1.msra.mxu0 %v593
        %1254 = vmatprep.subr.mxu0 %v598
        %1255 = vmatpush1.msra.mxu0 %v597
        %1256 = vmatprep.subr.mxu0 %v602
        %1257 = vmatpush1.msra.mxu0 %v601
        %1258 = vmatprep.subr.mxu0 %v606
        %1259 = vmatpush1.msra.mxu0 %v605
        %1260 = vmatprep.subr.mxu0 %v610
        %1261 = vmatpush1.msra.mxu0 %v609
        %1262 = vmatprep.subr.mxu0 %v614
        %1263 = vmatpush1.msra.mxu0 %v613
        %1264 = vmatprep.subr.mxu0 %v618
        %1265 = vmatpush1.msra.mxu0 %v617
        %1266 = vmatprep.subr.mxu0 %v622
        %1267 = vmatpush1.msra.mxu0 %v621
        %1268 = vmatprep.subr.mxu0 %v626
        %1269 = vmatpush1.msra.mxu0 %v625
        %1270 = vmatprep.subr.mxu0 %v630
        %1271 = vmatpush1.msra.mxu0 %v629
        %1272 = vmatprep.subr.mxu0 %v634
        %1273 = vmatpush1.msra.mxu0 %v633
        %1274 = vmatprep.mubr.f32.mxu0 %v248
        %1275 = vmatmul.mubr.f32.gmra.mrb[0].mxu0 %v247
        %v1276 = vpop.f32.mrb[0].mxu0
        %v1277 = vadd.f32 %v1206, %v1276
        %v1278 = vpop.f32.mrb[0].mxu0
        %v1279 = vadd.f32 %v1208, %v1278
        %1280 = vdwg.mxu0
        %1281 = vmatprep.subr.mxu0 %v638
        %1282 = vmatpush1.msra.mxu0 %v637
        %1283 = vmatprep.subr.mxu0 %v642
        %1284 = vmatpush1.msra.mxu0 %v641
        %1285 = vmatprep.subr.mxu0 %v646
        %1286 = vmatpush1.msra.mxu0 %v645
        %1287 = vmatprep.subr.mxu0 %v650
        %1288 = vmatpush1.msra.mxu0 %v649
        %1289 = vmatprep.subr.mxu0 %v654
        %1290 = vmatpush1.msra.mxu0 %v653
        %1291 = vmatprep.subr.mxu0 %v658
        %1292 = vmatpush1.msra.mxu0 %v657
        %1293 = vmatprep.subr.mxu0 %v662
        %1294 = vmatpush1.msra.mxu0 %v661
        %1295 = vmatprep.subr.mxu0 %v666
        %1296 = vmatpush1.msra.mxu0 %v665
        %1297 = vmatprep.subr.mxu0 %v670
        %1298 = vmatpush1.msra.mxu0 %v669
        %1299 = vmatprep.subr.mxu0 %v674
        %1300 = vmatpush1.msra.mxu0 %v673
        %1301 = vmatprep.subr.mxu0 %v678
        %1302 = vmatpush1.msra.mxu0 %v677
        %1303 = vmatprep.subr.mxu0 %v682
        %1304 = vmatpush1.msra.mxu0 %v681
        %1305 = vmatprep.subr.mxu0 %v686
        %1306 = vmatpush1.msra.mxu0 %v685
        %1307 = vmatprep.subr.mxu0 %v690
        %1308 = vmatpush1.msra.mxu0 %v689
        %1309 = vmatprep.subr.mxu0 %v694
        %1310 = vmatpush1.msra.mxu0 %v693
        %1311 = vmatprep.subr.mxu0 %v698
        %1312 = vmatpush1.msra.mxu0 %v697
        %1313 = vmatprep.subr.mxu0 %v702
        %1314 = vmatpush1.msra.mxu0 %v701
        %1315 = vmatprep.subr.mxu0 %v706
        %1316 = vmatpush1.msra.mxu0 %v705
        %1317 = vmatprep.subr.mxu0 %v710
        %1318 = vmatpush1.msra.mxu0 %v709
        %1319 = vmatprep.subr.mxu0 %v714
        %1320 = vmatpush1.msra.mxu0 %v713
        %1321 = vmatprep.subr.mxu0 %v718
        %1322 = vmatpush1.msra.mxu0 %v717
        %1323 = vmatprep.subr.mxu0 %v722
        %1324 = vmatpush1.msra.mxu0 %v721
        %1325 = vmatprep.subr.mxu0 %v726
        %1326 = vmatpush1.msra.mxu0 %v725
        %1327 = vmatprep.subr.mxu0 %v730
        %1328 = vmatpush1.msra.mxu0 %v729
        %1329 = vmatprep.subr.mxu0 %v734
        %1330 = vmatpush1.msra.mxu0 %v733
        %1331 = vmatprep.subr.mxu0 %v738
        %1332 = vmatpush1.msra.mxu0 %v737
        %1333 = vmatprep.subr.mxu0 %v742
        %1334 = vmatpush1.msra.mxu0 %v741
        %1335 = vmatprep.subr.mxu0 %v746
        %1336 = vmatpush1.msra.mxu0 %v745
        %1337 = vmatprep.subr.mxu0 %v750
        %1338 = vmatpush1.msra.mxu0 %v749
        %1339 = vmatprep.subr.mxu0 %v754
        %1340 = vmatpush1.msra.mxu0 %v753
        %1341 = vmatprep.subr.mxu0 %v758
        %1342 = vmatpush1.msra.mxu0 %v757
        %1343 = vmatprep.subr.mxu0 %v762
        %1344 = vmatpush1.msra.mxu0 %v761
        %1345 = vmatprep.mubr.f32.mxu0 %v250
        %1346 = vmatmul.mubr.f32.gmra.mrb[0].mxu0 %v249
        %v1347 = vpop.f32.mrb[0].mxu0
        %v1348 = vadd.f32 %v1277, %v1347
        %v1349 = vpop.f32.mrb[0].mxu0
        %v1350 = vadd.f32 %v1279, %v1349
        %1351 = vdwg.mxu0
        %v1352 = vmax.f32 %v1064, 0.0
        %v1353 = vmax.f32 %v1066, 0.0
        %v1354 = vmax.f32 %v1348, 0.0
        %v1355 = vmax.f32 %v1350, 0.0
        %1356 = vst [vmem:[%s235] sm:$0xff] %v1352
        %1357 = vst [vmem:[%s235 + $0x8] sm:$0xff] %v1353
        %1358 = vst [vmem:[%s235 + $0x10] sm:$0xff] %v1354
        %1359 = vst [vmem:[%s235 + $0x18] sm:$0xff] %v1355
        %s1360 = sand.u32 %s116, 1
        %s1361 = scalar_lea.sflag [#allocation4], %s1360
        %s1362 = sand.u32 %s116, 1
        %s1363 = smul.addr %s1362, 32
        %s1364 = scalar_lea.vmem [#allocation8], %s1363
        // Predicated region
        $region45: #{tpu_custom_call.1} parent=31 // pred_check
          %p1365 = pneg %p126
        $region46: #{tpu_custom_call.1} parent=31 // pred_check_branch
          %1367 = sbr.rel (%p1365) target = $region48
        $region47: #{tpu_custom_call.1} parent=31 // pred_region
          %s1368 = smul.u32 4, %s26
          %s1370 = ssub.s32 512, 512
          %1371 = vsyncadd %s1361, %s1370
          %s1372 = smul.addr %s25, 8
          %s1373 = sadd.s32 %s1368, %s1372
          %s1374 = smul.addr %s1373, 128
          %s1375 = scalar_lea.hbm %s3, %s1374
          %s1377 = sshll.u32 %s1364, 4
          %s1378 = int_to_ptr.vmem [resolvable:$true] %s1377
          %1380 = dma.vmem_to_hbm [thread:$0]  %s1378, 512, %s1375, %s1361
        $region48: #{tpu_custom_call.1} parent=31 // pred_fallthru
          _
      $region32: #{tpu_custom_call.1} parent=5 // pred_fallthru
        _
      %p1381 = scmp.le.s32.totalorder 2, %s16
      // Predicated region
      $region49: #{tpu_custom_call.1} parent=5 // pred_check
        %p1382 = pneg %p1381
      $region50: #{tpu_custom_call.1} parent=5 // pred_check_branch
        %1384 = sbr.rel (%p1382) target = $region52
      $region51: #{tpu_custom_call.1} parent=5 // pred_region
        %s1385 = ssub.s32 %s16, 2
        // Predicated region
        $region53: #{tpu_custom_call.1} parent=51 // pred_check
          %p1386 = pneg %p132
        $region54: #{tpu_custom_call.1} parent=51 // pred_check_branch
          %1388 = sbr.rel (%p1386) target = $region56
        $region55: #{tpu_custom_call.1} parent=51 // pred_region
          %s1389 = sand.u32 %s117, 1
          %s1390 = scalar_lea.sflag [#allocation4], %s1389
          %s1391 = sand.u32 %s117, 1
          %s1392 = smul.addr %s1391, 32
          %s1393 = scalar_lea.vmem [#allocation8], %s1392
          %1394 = dma.done %s1390, 512
        $region56: #{tpu_custom_call.1} parent=51 // pred_fallthru
          _
      $region52: #{tpu_custom_call.1} parent=5 // pred_fallthru
        _
    $region6: #{tpu_custom_call.1} parent=1 // loop_footer
      %s20 = sadd.s32 1, %s16
    $region7: #{tpu_custom_call.1} parent=1 // loop_footer_branch
      %15 = sbr.rel target = $region3
    $region8: #{tpu_custom_call.1} parent=1 // loop_exit
      _
    %1395 = vsyncpa [#allocation3], 1
    %s1396 = scalar_lea.sflag [#allocation3], 1
    %1397 = vsyncpa %s1396, 1
    %1398 = vsyncpa [#allocation6], 1
    %s1399 = scalar_lea.sflag [#allocation6], 1
    %1400 = vsyncpa %s1399, 1
    %1401 = vsyncpa [#allocation4], 1
    %s1402 = scalar_lea.sflag [#allocation4], 1
    %1403 = vsyncpa %s1402, 1

</llo_original>
